<compile_context>
chip_gen: v5e
topology: v5e:2x2
jax: 0.10.0
libtpu: 0.0.40
codegen_flags: <defaults>
</compile_context>

<pallas_src>
import functools

import jax
import jax.numpy as jnp
from jax.experimental import pallas as pl
from jax.experimental.pallas import tpu as pltpu


def _round_up(a, b):
    return (a + b - 1) // b * b


def bnet_kernel(x_ref, cosp_ref, wctx_ref, o_ref, *, shot_num, feat_dim, channel,
                strip_rows, num_strips):
    """Fused BNet forward on one row-block, register-blocked into row strips.

    x_ref:    (bn, shot_num*D)  VMEM  -- flattened shot/feature axes (lane-dense)
    cosp_ref: (R, C)            VMEM  -- host-folded Cos conv params (see wrapper)
    wctx_ref: (C*(SN+1),)       SMEM  -- BNet conv1 weights (SN) + bias, per channel
    o_ref:    (bn, D + C)       VMEM  -- [context | sim]
    """
    SN, D, C = shot_num, feat_dim, channel
    half = SN // 2
    KK = half * half
    T = half * (half + 1) // 2          # symmetric Gram pairs j >= k
    OFF_SYM = KK
    OFF_WB = KK + T
    OFF_WB2 = OFF_WB + half
    OFF_DBSQ = OFF_WB2 + half
    rs = strip_rows
    f32 = jnp.float32
    eps2 = jnp.float32(1e-8) * jnp.float32(1e-8)

    def strip_body(si):
        if isinstance(si, int):
            r0 = si * rs                          # static strip offset (unrolled path)
        else:
            r0 = pl.multiple_of(si * rs, rs)      # dynamic, sublane-aligned
        rows = pl.ds(r0, rs)

        # Load the SN shot slabs for this strip once (lane-aligned static slices);
        # they stay in vregs and are reused by both branches.
        xs = []
        for k in range(SN):
            xk = x_ref[rows, k * D:(k + 1) * D]
            if xk.dtype != f32:
                xk = xk.astype(f32)
            xs.append(xk)

        # ---- context branch: max_c ( sum_k w1[c,k] * x[:,k,:] + b1[c] ) ----
        ctx = None
        for c in range(C):                        # C, SN small static ints -> unrolled
            base = c * (SN + 1)
            cand = xs[0] * wctx_ref[base]         # scalar (SMEM) * resident vregs
            for k in range(1, SN):
                cand = cand + xs[k] * wctx_ref[base + k]
            cand = cand + wctx_ref[base + SN]     # bias
            ctx = cand if ctx is None else jnp.maximum(ctx, cand)
        o_ref[rows, 0:D] = ctx.astype(o_ref.dtype)

        # ---- cosine-similarity branch via per-row quadratic forms ----
        p1, p2 = xs[:half], xs[half:]
        s1 = [jnp.sum(p1[k], axis=1, keepdims=True) for k in range(half)]   # (rs, 1)
        s2 = [jnp.sum(p2[k], axis=1, keepdims=True) for k in range(half)]

        dbsq = cosp_ref[OFF_DBSQ, :][None, :]                 # (1, C): D * b2^2
        dot = jnp.broadcast_to(dbsq, (rs, C))
        n1 = dot
        n2 = dot
        sym = 0
        for k in range(half):
            for j in range(half):                             # all pairs for the dot
                g12 = jnp.sum(p1[k] * p2[j], axis=1, keepdims=True)
                dot = dot + g12 * cosp_ref[k * half + j, :][None, :]
            for j in range(k, half):                          # symmetric pairs for norms
                wsym = cosp_ref[OFF_SYM + sym, :][None, :]    # off-diag pre-doubled
                sym += 1
                n1 = n1 + jnp.sum(p1[k] * p1[j], axis=1, keepdims=True) * wsym
                n2 = n2 + jnp.sum(p2[k] * p2[j], axis=1, keepdims=True) * wsym
            wb = cosp_ref[OFF_WB + k, :][None, :]             # w2[:,k]*b2
            wb2 = cosp_ref[OFF_WB2 + k, :][None, :]           # 2*w2[:,k]*b2
            dot = dot + (s1[k] + s2[k]) * wb
            n1 = n1 + s1[k] * wb2
            n2 = n2 + s2[k] * wb2

        sim = dot * jax.lax.rsqrt(jnp.maximum(n1 * n2, eps2))
        o_ref[rows, D:D + C] = sim.astype(o_ref.dtype)

    if num_strips <= 4:
        for si in range(num_strips):              # small blocks: fully static offsets
            strip_body(si)
    else:
        pl.loop(0, num_strips)(strip_body)        # rolled loop, big body already fills slots


def bnet_forward(x, w1, b1, w2, b2, shot_num, channel, block_n=512):
    """x: (B, S, shot_num, D) -> (B*S, D + channel) f32 (BNet.forward semantics)."""
    B, S, SN, D = x.shape
    assert SN == shot_num and SN % 2 == 0
    assert D % 128 == 0, "feature dim must be a multiple of 128 for lane-aligned slices"
    half = SN // 2
    KK = half * half
    T = half * (half + 1) // 2
    C = channel
    N = B * S
    f32 = jnp.float32

    # Flatten the shot axis into the lane axis (metadata-only reshape; dtype untouched).
    xf = x.reshape(N, SN * D)

    # Block selection: no row padding (Pallas handles the partial last block; its
    # garbage rows are never written back).  Keep >=2 grid steps when N allows so
    # dimension_semantics=("parallel",) actually uses both TensorCores on v7x, and
    # balance bn so padded-row waste stays < 8 rows per block.
    nblocks = pl.cdiv(N, block_n)
    if N > 8:
        nblocks = max(nblocks, 2)
    bn = _round_up(pl.cdiv(N, nblocks), 8)
    grid = (pl.cdiv(N, bn),)

    # Strip (register-block) size: 16 rows when it divides bn and register pressure
    # allows (SN slabs of (rs, D) f32 must stay well under the 64-vreg file).
    rs = 16 if (bn % 16 == 0 and SN * (D // 128) <= 12) else 8
    num_strips = bn // rs

    w1 = w1.astype(f32)
    b1 = b1.astype(f32)
    w2 = w2.astype(f32)
    b2 = b2.astype(f32)

    # Host-folded Cos conv params, rows:
    #   [0, KK)                : w2[:,k]*w2[:,j]                (dot, all pairs k,j)
    #   [KK, KK+T)             : (1 if j==k else 2)*w2[:,k]*w2[:,j]  (norms, j>=k)
    #   [KK+T, KK+T+half)      : w2[:,k]*b2                     (dot cross term)
    #   [KK+T+half, ...+2half) : 2*w2[:,k]*b2                   (norm cross term)
    #   last row               : D*b2^2
    wdot = (w2[:, :, None] * w2[:, None, :]).reshape(C, KK).T          # (KK, C)
    sym_rows = []
    for k in range(half):
        for j in range(k, half):
            fct = 1.0 if j == k else 2.0
            sym_rows.append(fct * w2[:, k] * w2[:, j])
    wsym = jnp.stack(sym_rows, axis=0)                                 # (T, C)
    wb = (w2 * b2[:, None]).T                                          # (half, C)
    wb2 = 2.0 * wb
    dbsq = (jnp.float32(D) * b2 * b2)[None, :]                         # (1, C)
    cosp = jnp.concatenate([wdot, wsym, wb, wb2, dbsq], axis=0).astype(f32)
    R = KK + T + 2 * half + 1

    # BNet conv1 weights + bias, flattened to 1-D for compact SMEM scalar reads.
    wctx = jnp.concatenate([w1, b1[:, None]], axis=1).reshape(-1).astype(f32)

    # VMEM request sized from the actual double-buffered footprint (+ headroom).
    in_bytes = bn * SN * D * xf.dtype.itemsize
    out_bytes = bn * (D + C) * 4
    vmem_limit = int(min(100 * 2**20, max(8 * 2**20, 2 * (in_bytes + out_bytes) + (2 << 20))))

    kern = functools.partial(bnet_kernel, shot_num=SN, feat_dim=D, channel=C,
                             strip_rows=rs, num_strips=num_strips)

    out = pl.pallas_call(
        kern,
        out_shape=jax.ShapeDtypeStruct((N, D + C), jnp.float32),
        grid_spec=pltpu.PrefetchScalarGridSpec(
            num_scalar_prefetch=0,
            grid=grid,
            in_specs=[
                pl.BlockSpec((bn, SN * D), lambda i: (i, 0)),
                pl.BlockSpec((R, C), lambda i: (0, 0)),               # resident VMEM table
                pl.BlockSpec(memory_space=pltpu.MemorySpace.SMEM),    # whole array in SMEM
            ],
            out_specs=pl.BlockSpec((bn, D + C), lambda i: (i, 0)),
        ),
        compiler_params=pltpu.CompilerParams(
            dimension_semantics=("parallel",),   # shards row blocks across v7x's 2 TCs
            vmem_limit_bytes=vmem_limit,
        ),
    )(xf, cosp, wctx)
    return out


def reference(x, w1, b1, w2, b2, shot_num, channel):
    """Pure-JAX mirror of BNet.forward (PyTorch semantics), f32-exact einsums."""
    B, S, SN, D = x.shape
    N = B * S
    half = SN // 2
    hp = jax.lax.Precision.HIGHEST
    xr = x.reshape(N, SN, D).astype(jnp.float32)
    # context = maxpool over channels of Conv2d(1, C, (SN, 1))
    ctx = jnp.einsum("ck,nkd->ncd", w1, xr, precision=hp) + b1[None, :, None]
    ctx = jnp.max(ctx, axis=1)
    # sim = cosine_similarity(Cos.conv1(part1), Cos.conv1(part2), dim=2)
    p1, p2 = xr[:, :half], xr[:, half:]
    o1 = jnp.einsum("ck,nkd->ncd", w2, p1, precision=hp) + b2[None, :, None]
    o2 = jnp.einsum("ck,nkd->ncd", w2, p2, precision=hp) + b2[None, :, None]
    eps = 1e-8
    dot = jnp.sum(o1 * o2, axis=-1)
    n1 = jnp.sum(o1 * o1, axis=-1)
    n2 = jnp.sum(o2 * o2, axis=-1)
    sim = dot / jnp.sqrt(jnp.maximum(n1 * n2, eps * eps))
    return jnp.concatenate([ctx, sim], axis=1)


if __name__ == "__main__":
    # Small config consistent with the module docstring [8,10,4,512] -> [80, 512+C]:
    # here [4,20,4,256] -> [80, 256+32].  Exercises multi-block grid, the rolled
    # strip loop, and the partial-last-block (no-pad) path.
    B, S, shot_num, D = 4, 20, 4, 256
    channel = 32
    half = shot_num // 2

    key = jax.random.PRNGKey(0)
    kx, kw1, kb1, kw2, kb2 = jax.random.split(key, 5)
    x = jax.random.normal(kx, (B, S, shot_num, D), dtype=jnp.float32)

    # Deterministic PyTorch-style Conv2d init: U(-1/sqrt(fan_in), 1/sqrt(fan_in)).
    bound1 = 1.0 / float(shot_num) ** 0.5          # BNet.conv1: kernel (shot_num, 1)
    w1 = jax.random.uniform(kw1, (channel, shot_num), jnp.float32, -bound1, bound1)
    b1 = jax.random.uniform(kb1, (channel,), jnp.float32, -bound1, bound1)
    bound2 = 1.0 / float(half) ** 0.5              # Cos.conv1: kernel (half, 1)
    w2 = jax.random.uniform(kw2, (channel, half), jnp.float32, -bound2, bound2)
    b2 = jax.random.uniform(kb2, (channel,), jnp.float32, -bound2, bound2)

    out = bnet_forward(x, w1, b1, w2, b2, shot_num, channel)
    out = jax.block_until_ready(out)

    ref = reference(x, w1, b1, w2, b2, shot_num, channel)
    assert out.shape == (B * S, D + channel)
    max_err = float(jnp.max(jnp.abs(out - ref)))
    assert max_err < 5e-4, max_err
    print("KERNEL_OK")
</pallas_src>

<mosaic_0001>
module attributes {stable_mosaic.version = 11 : i64} {
  func.func @bnet_kernel(%arg0: i32, %arg1: memref<40x1024xf32, #tpu.memory_space<vmem>>, %arg2: memref<12x32xf32, #tpu.memory_space<vmem>>, %arg3: memref<160xf32, #tpu.memory_space<smem>>, %arg4: memref<40x288xf32, #tpu.memory_space<vmem>>) attributes {dimension_semantics = [#tpu.dimension_semantics<parallel>], iteration_bounds = array<i64: 2>, scalar_prefetch = 0 : i64, scratch_operands = 0 : i64, tpu.core_type = #tpu.core_type<tc>, window_params = [{transform_indices = @transform_0, window_bounds = array<i64: 40, 1024>}, {pipeline_mode = #tpu.pipeline_mode<synchronous>, transform_indices = @transform_1, window_bounds = array<i64: 12, 32>}, {transform_indices = @transform_2, window_bounds = array<i64: 160>}, {transform_indices = @transform_3, window_bounds = array<i64: 40, 288>}]} {
    %cst = arith.constant 9.99999993E-9 : f32
    %cst_0 = arith.constant 9.99999993E-9 : f32
    %0 = arith.mulf %cst, %cst_0 : f32
    %c0_i32 = arith.constant 0 : i32
    %c5_i32 = arith.constant 5 : i32
    %1 = arith.addi %c0_i32, %c5_i32 : i32
    %c1_i32 = arith.constant 1 : i32
    scf.for %arg5 = %c0_i32 to %1 step %c1_i32  : i32 {
      %c1_i32_2 = arith.constant 1 : i32
      %2 = arith.muli %arg5, %c1_i32_2 : i32
      %c0_i32_3 = arith.constant 0 : i32
      %3 = arith.addi %c0_i32_3, %2 : i32
      %c8_i32 = arith.constant 8 : i32
      %4 = arith.muli %3, %c8_i32 : i32
      %5 = tpu.assume_multiple %4, 8 : i32
      %6 = arith.index_cast %5 : i32 to index
      %c0 = arith.constant 0 : index
      %7 = vector.load %arg1[%6, %c0] : memref<40x1024xf32, #tpu.memory_space<vmem>>, vector<8x256xf32>
      %8 = arith.index_cast %5 : i32 to index
      %c256 = arith.constant 256 : index
      %9 = vector.load %arg1[%8, %c256] : memref<40x1024xf32, #tpu.memory_space<vmem>>, vector<8x256xf32>
      %10 = arith.index_cast %5 : i32 to index
      %c512 = arith.constant 512 : index
      %11 = vector.load %arg1[%10, %c512] : memref<40x1024xf32, #tpu.memory_space<vmem>>, vector<8x256xf32>
      %12 = arith.index_cast %5 : i32 to index
      %c768 = arith.constant 768 : index
      %13 = vector.load %arg1[%12, %c768] : memref<40x1024xf32, #tpu.memory_space<vmem>>, vector<8x256xf32>
      %c0_4 = arith.constant 0 : index
      %14 = memref.load %arg3[%c0_4] : memref<160xf32, #tpu.memory_space<smem>>
      %15 = vector.broadcast %14 : f32 to vector<8x256xf32>
      %16 = arith.mulf %7, %15 : vector<8x256xf32>
      %c1 = arith.constant 1 : index
      %17 = memref.load %arg3[%c1] : memref<160xf32, #tpu.memory_space<smem>>
      %18 = vector.broadcast %17 : f32 to vector<8x256xf32>
      %19 = arith.mulf %9, %18 : vector<8x256xf32>
      %20 = arith.addf %16, %19 : vector<8x256xf32>
      %c2 = arith.constant 2 : index
      %21 = memref.load %arg3[%c2] : memref<160xf32, #tpu.memory_space<smem>>
      %22 = vector.broadcast %21 : f32 to vector<8x256xf32>
      %23 = arith.mulf %11, %22 : vector<8x256xf32>
      %24 = arith.addf %20, %23 : vector<8x256xf32>
      %c3 = arith.constant 3 : index
      %25 = memref.load %arg3[%c3] : memref<160xf32, #tpu.memory_space<smem>>
      %26 = vector.broadcast %25 : f32 to vector<8x256xf32>
      %27 = arith.mulf %13, %26 : vector<8x256xf32>
      %28 = arith.addf %24, %27 : vector<8x256xf32>
      %c4 = arith.constant 4 : index
      %29 = memref.load %arg3[%c4] : memref<160xf32, #tpu.memory_space<smem>>
      %30 = vector.broadcast %29 : f32 to vector<8x256xf32>
      %31 = arith.addf %28, %30 : vector<8x256xf32>
      %c5 = arith.constant 5 : index
      %32 = memref.load %arg3[%c5] : memref<160xf32, #tpu.memory_space<smem>>
      %33 = vector.broadcast %32 : f32 to vector<8x256xf32>
      %34 = arith.mulf %7, %33 : vector<8x256xf32>
      %c6 = arith.constant 6 : index
      %35 = memref.load %arg3[%c6] : memref<160xf32, #tpu.memory_space<smem>>
      %36 = vector.broadcast %35 : f32 to vector<8x256xf32>
      %37 = arith.mulf %9, %36 : vector<8x256xf32>
      %38 = arith.addf %34, %37 : vector<8x256xf32>
      %c7 = arith.constant 7 : index
      %39 = memref.load %arg3[%c7] : memref<160xf32, #tpu.memory_space<smem>>
      %40 = vector.broadcast %39 : f32 to vector<8x256xf32>
      %41 = arith.mulf %11, %40 : vector<8x256xf32>
      %42 = arith.addf %38, %41 : vector<8x256xf32>
      %c8 = arith.constant 8 : index
      %43 = memref.load %arg3[%c8] : memref<160xf32, #tpu.memory_space<smem>>
      %44 = vector.broadcast %43 : f32 to vector<8x256xf32>
      %45 = arith.mulf %13, %44 : vector<8x256xf32>
      %46 = arith.addf %42, %45 : vector<8x256xf32>
      %c9 = arith.constant 9 : index
      %47 = memref.load %arg3[%c9] : memref<160xf32, #tpu.memory_space<smem>>
      %48 = vector.broadcast %47 : f32 to vector<8x256xf32>
      %49 = arith.addf %46, %48 : vector<8x256xf32>
      %50 = arith.maximumf %31, %49 : vector<8x256xf32>
      %c10 = arith.constant 10 : index
      %51 = memref.load %arg3[%c10] : memref<160xf32, #tpu.memory_space<smem>>
      %52 = vector.broadcast %51 : f32 to vector<8x256xf32>
      %53 = arith.mulf %7, %52 : vector<8x256xf32>
      %c11 = arith.constant 11 : index
      %54 = memref.load %arg3[%c11] : memref<160xf32, #tpu.memory_space<smem>>
      %55 = vector.broadcast %54 : f32 to vector<8x256xf32>
      %56 = arith.mulf %9, %55 : vector<8x256xf32>
      %57 = arith.addf %53, %56 : vector<8x256xf32>
      %c12 = arith.constant 12 : index
      %58 = memref.load %arg3[%c12] : memref<160xf32, #tpu.memory_space<smem>>
      %59 = vector.broadcast %58 : f32 to vector<8x256xf32>
      %60 = arith.mulf %11, %59 : vector<8x256xf32>
      %61 = arith.addf %57, %60 : vector<8x256xf32>
      %c13 = arith.constant 13 : index
      %62 = memref.load %arg3[%c13] : memref<160xf32, #tpu.memory_space<smem>>
      %63 = vector.broadcast %62 : f32 to vector<8x256xf32>
      %64 = arith.mulf %13, %63 : vector<8x256xf32>
      %65 = arith.addf %61, %64 : vector<8x256xf32>
      %c14 = arith.constant 14 : index
      %66 = memref.load %arg3[%c14] : memref<160xf32, #tpu.memory_space<smem>>
      %67 = vector.broadcast %66 : f32 to vector<8x256xf32>
      %68 = arith.addf %65, %67 : vector<8x256xf32>
      %69 = arith.maximumf %50, %68 : vector<8x256xf32>
      %c15 = arith.constant 15 : index
      %70 = memref.load %arg3[%c15] : memref<160xf32, #tpu.memory_space<smem>>
      %71 = vector.broadcast %70 : f32 to vector<8x256xf32>
      %72 = arith.mulf %7, %71 : vector<8x256xf32>
      %c16 = arith.constant 16 : index
      %73 = memref.load %arg3[%c16] : memref<160xf32, #tpu.memory_space<smem>>
      %74 = vector.broadcast %73 : f32 to vector<8x256xf32>
      %75 = arith.mulf %9, %74 : vector<8x256xf32>
      %76 = arith.addf %72, %75 : vector<8x256xf32>
      %c17 = arith.constant 17 : index
      %77 = memref.load %arg3[%c17] : memref<160xf32, #tpu.memory_space<smem>>
      %78 = vector.broadcast %77 : f32 to vector<8x256xf32>
      %79 = arith.mulf %11, %78 : vector<8x256xf32>
      %80 = arith.addf %76, %79 : vector<8x256xf32>
      %c18 = arith.constant 18 : index
      %81 = memref.load %arg3[%c18] : memref<160xf32, #tpu.memory_space<smem>>
      %82 = vector.broadcast %81 : f32 to vector<8x256xf32>
      %83 = arith.mulf %13, %82 : vector<8x256xf32>
      %84 = arith.addf %80, %83 : vector<8x256xf32>
      %c19 = arith.constant 19 : index
      %85 = memref.load %arg3[%c19] : memref<160xf32, #tpu.memory_space<smem>>
      %86 = vector.broadcast %85 : f32 to vector<8x256xf32>
      %87 = arith.addf %84, %86 : vector<8x256xf32>
      %88 = arith.maximumf %69, %87 : vector<8x256xf32>
      %c20 = arith.constant 20 : index
      %89 = memref.load %arg3[%c20] : memref<160xf32, #tpu.memory_space<smem>>
      %90 = vector.broadcast %89 : f32 to vector<8x256xf32>
      %91 = arith.mulf %7, %90 : vector<8x256xf32>
      %c21 = arith.constant 21 : index
      %92 = memref.load %arg3[%c21] : memref<160xf32, #tpu.memory_space<smem>>
      %93 = vector.broadcast %92 : f32 to vector<8x256xf32>
      %94 = arith.mulf %9, %93 : vector<8x256xf32>
      %95 = arith.addf %91, %94 : vector<8x256xf32>
      %c22 = arith.constant 22 : index
      %96 = memref.load %arg3[%c22] : memref<160xf32, #tpu.memory_space<smem>>
      %97 = vector.broadcast %96 : f32 to vector<8x256xf32>
      %98 = arith.mulf %11, %97 : vector<8x256xf32>
      %99 = arith.addf %95, %98 : vector<8x256xf32>
      %c23 = arith.constant 23 : index
      %100 = memref.load %arg3[%c23] : memref<160xf32, #tpu.memory_space<smem>>
      %101 = vector.broadcast %100 : f32 to vector<8x256xf32>
      %102 = arith.mulf %13, %101 : vector<8x256xf32>
      %103 = arith.addf %99, %102 : vector<8x256xf32>
      %c24 = arith.constant 24 : index
      %104 = memref.load %arg3[%c24] : memref<160xf32, #tpu.memory_space<smem>>
      %105 = vector.broadcast %104 : f32 to vector<8x256xf32>
      %106 = arith.addf %103, %105 : vector<8x256xf32>
      %107 = arith.maximumf %88, %106 : vector<8x256xf32>
      %c25 = arith.constant 25 : index
      %108 = memref.load %arg3[%c25] : memref<160xf32, #tpu.memory_space<smem>>
      %109 = vector.broadcast %108 : f32 to vector<8x256xf32>
      %110 = arith.mulf %7, %109 : vector<8x256xf32>
      %c26 = arith.constant 26 : index
      %111 = memref.load %arg3[%c26] : memref<160xf32, #tpu.memory_space<smem>>
      %112 = vector.broadcast %111 : f32 to vector<8x256xf32>
      %113 = arith.mulf %9, %112 : vector<8x256xf32>
      %114 = arith.addf %110, %113 : vector<8x256xf32>
      %c27 = arith.constant 27 : index
      %115 = memref.load %arg3[%c27] : memref<160xf32, #tpu.memory_space<smem>>
      %116 = vector.broadcast %115 : f32 to vector<8x256xf32>
      %117 = arith.mulf %11, %116 : vector<8x256xf32>
      %118 = arith.addf %114, %117 : vector<8x256xf32>
      %c28 = arith.constant 28 : index
      %119 = memref.load %arg3[%c28] : memref<160xf32, #tpu.memory_space<smem>>
      %120 = vector.broadcast %119 : f32 to vector<8x256xf32>
      %121 = arith.mulf %13, %120 : vector<8x256xf32>
      %122 = arith.addf %118, %121 : vector<8x256xf32>
      %c29 = arith.constant 29 : index
      %123 = memref.load %arg3[%c29] : memref<160xf32, #tpu.memory_space<smem>>
      %124 = vector.broadcast %123 : f32 to vector<8x256xf32>
      %125 = arith.addf %122, %124 : vector<8x256xf32>
      %126 = arith.maximumf %107, %125 : vector<8x256xf32>
      %c30 = arith.constant 30 : index
      %127 = memref.load %arg3[%c30] : memref<160xf32, #tpu.memory_space<smem>>
      %128 = vector.broadcast %127 : f32 to vector<8x256xf32>
      %129 = arith.mulf %7, %128 : vector<8x256xf32>
      %c31 = arith.constant 31 : index
      %130 = memref.load %arg3[%c31] : memref<160xf32, #tpu.memory_space<smem>>
      %131 = vector.broadcast %130 : f32 to vector<8x256xf32>
      %132 = arith.mulf %9, %131 : vector<8x256xf32>
      %133 = arith.addf %129, %132 : vector<8x256xf32>
      %c32 = arith.constant 32 : index
      %134 = memref.load %arg3[%c32] : memref<160xf32, #tpu.memory_space<smem>>
      %135 = vector.broadcast %134 : f32 to vector<8x256xf32>
      %136 = arith.mulf %11, %135 : vector<8x256xf32>
      %137 = arith.addf %133, %136 : vector<8x256xf32>
      %c33 = arith.constant 33 : index
      %138 = memref.load %arg3[%c33] : memref<160xf32, #tpu.memory_space<smem>>
      %139 = vector.broadcast %138 : f32 to vector<8x256xf32>
      %140 = arith.mulf %13, %139 : vector<8x256xf32>
      %141 = arith.addf %137, %140 : vector<8x256xf32>
      %c34 = arith.constant 34 : index
      %142 = memref.load %arg3[%c34] : memref<160xf32, #tpu.memory_space<smem>>
      %143 = vector.broadcast %142 : f32 to vector<8x256xf32>
      %144 = arith.addf %141, %143 : vector<8x256xf32>
      %145 = arith.maximumf %126, %144 : vector<8x256xf32>
      %c35 = arith.constant 35 : index
      %146 = memref.load %arg3[%c35] : memref<160xf32, #tpu.memory_space<smem>>
      %147 = vector.broadcast %146 : f32 to vector<8x256xf32>
      %148 = arith.mulf %7, %147 : vector<8x256xf32>
      %c36 = arith.constant 36 : index
      %149 = memref.load %arg3[%c36] : memref<160xf32, #tpu.memory_space<smem>>
      %150 = vector.broadcast %149 : f32 to vector<8x256xf32>
      %151 = arith.mulf %9, %150 : vector<8x256xf32>
      %152 = arith.addf %148, %151 : vector<8x256xf32>
      %c37 = arith.constant 37 : index
      %153 = memref.load %arg3[%c37] : memref<160xf32, #tpu.memory_space<smem>>
      %154 = vector.broadcast %153 : f32 to vector<8x256xf32>
      %155 = arith.mulf %11, %154 : vector<8x256xf32>
      %156 = arith.addf %152, %155 : vector<8x256xf32>
      %c38 = arith.constant 38 : index
      %157 = memref.load %arg3[%c38] : memref<160xf32, #tpu.memory_space<smem>>
      %158 = vector.broadcast %157 : f32 to vector<8x256xf32>
      %159 = arith.mulf %13, %158 : vector<8x256xf32>
      %160 = arith.addf %156, %159 : vector<8x256xf32>
      %c39 = arith.constant 39 : index
      %161 = memref.load %arg3[%c39] : memref<160xf32, #tpu.memory_space<smem>>
      %162 = vector.broadcast %161 : f32 to vector<8x256xf32>
      %163 = arith.addf %160, %162 : vector<8x256xf32>
      %164 = arith.maximumf %145, %163 : vector<8x256xf32>
      %c40 = arith.constant 40 : index
      %165 = memref.load %arg3[%c40] : memref<160xf32, #tpu.memory_space<smem>>
      %166 = vector.broadcast %165 : f32 to vector<8x256xf32>
      %167 = arith.mulf %7, %166 : vector<8x256xf32>
      %c41 = arith.constant 41 : index
      %168 = memref.load %arg3[%c41] : memref<160xf32, #tpu.memory_space<smem>>
      %169 = vector.broadcast %168 : f32 to vector<8x256xf32>
      %170 = arith.mulf %9, %169 : vector<8x256xf32>
      %171 = arith.addf %167, %170 : vector<8x256xf32>
      %c42 = arith.constant 42 : index
      %172 = memref.load %arg3[%c42] : memref<160xf32, #tpu.memory_space<smem>>
      %173 = vector.broadcast %172 : f32 to vector<8x256xf32>
      %174 = arith.mulf %11, %173 : vector<8x256xf32>
      %175 = arith.addf %171, %174 : vector<8x256xf32>
      %c43 = arith.constant 43 : index
      %176 = memref.load %arg3[%c43] : memref<160xf32, #tpu.memory_space<smem>>
      %177 = vector.broadcast %176 : f32 to vector<8x256xf32>
      %178 = arith.mulf %13, %177 : vector<8x256xf32>
      %179 = arith.addf %175, %178 : vector<8x256xf32>
      %c44 = arith.constant 44 : index
      %180 = memref.load %arg3[%c44] : memref<160xf32, #tpu.memory_space<smem>>
      %181 = vector.broadcast %180 : f32 to vector<8x256xf32>
      %182 = arith.addf %179, %181 : vector<8x256xf32>
      %183 = arith.maximumf %164, %182 : vector<8x256xf32>
      %c45 = arith.constant 45 : index
      %184 = memref.load %arg3[%c45] : memref<160xf32, #tpu.memory_space<smem>>
      %185 = vector.broadcast %184 : f32 to vector<8x256xf32>
      %186 = arith.mulf %7, %185 : vector<8x256xf32>
      %c46 = arith.constant 46 : index
      %187 = memref.load %arg3[%c46] : memref<160xf32, #tpu.memory_space<smem>>
      %188 = vector.broadcast %187 : f32 to vector<8x256xf32>
      %189 = arith.mulf %9, %188 : vector<8x256xf32>
      %190 = arith.addf %186, %189 : vector<8x256xf32>
      %c47 = arith.constant 47 : index
      %191 = memref.load %arg3[%c47] : memref<160xf32, #tpu.memory_space<smem>>
      %192 = vector.broadcast %191 : f32 to vector<8x256xf32>
      %193 = arith.mulf %11, %192 : vector<8x256xf32>
      %194 = arith.addf %190, %193 : vector<8x256xf32>
      %c48 = arith.constant 48 : index
      %195 = memref.load %arg3[%c48] : memref<160xf32, #tpu.memory_space<smem>>
      %196 = vector.broadcast %195 : f32 to vector<8x256xf32>
      %197 = arith.mulf %13, %196 : vector<8x256xf32>
      %198 = arith.addf %194, %197 : vector<8x256xf32>
      %c49 = arith.constant 49 : index
      %199 = memref.load %arg3[%c49] : memref<160xf32, #tpu.memory_space<smem>>
      %200 = vector.broadcast %199 : f32 to vector<8x256xf32>
      %201 = arith.addf %198, %200 : vector<8x256xf32>
      %202 = arith.maximumf %183, %201 : vector<8x256xf32>
      %c50 = arith.constant 50 : index
      %203 = memref.load %arg3[%c50] : memref<160xf32, #tpu.memory_space<smem>>
      %204 = vector.broadcast %203 : f32 to vector<8x256xf32>
      %205 = arith.mulf %7, %204 : vector<8x256xf32>
      %c51 = arith.constant 51 : index
      %206 = memref.load %arg3[%c51] : memref<160xf32, #tpu.memory_space<smem>>
      %207 = vector.broadcast %206 : f32 to vector<8x256xf32>
      %208 = arith.mulf %9, %207 : vector<8x256xf32>
      %209 = arith.addf %205, %208 : vector<8x256xf32>
      %c52 = arith.constant 52 : index
      %210 = memref.load %arg3[%c52] : memref<160xf32, #tpu.memory_space<smem>>
      %211 = vector.broadcast %210 : f32 to vector<8x256xf32>
      %212 = arith.mulf %11, %211 : vector<8x256xf32>
      %213 = arith.addf %209, %212 : vector<8x256xf32>
      %c53 = arith.constant 53 : index
      %214 = memref.load %arg3[%c53] : memref<160xf32, #tpu.memory_space<smem>>
      %215 = vector.broadcast %214 : f32 to vector<8x256xf32>
      %216 = arith.mulf %13, %215 : vector<8x256xf32>
      %217 = arith.addf %213, %216 : vector<8x256xf32>
      %c54 = arith.constant 54 : index
      %218 = memref.load %arg3[%c54] : memref<160xf32, #tpu.memory_space<smem>>
      %219 = vector.broadcast %218 : f32 to vector<8x256xf32>
      %220 = arith.addf %217, %219 : vector<8x256xf32>
      %221 = arith.maximumf %202, %220 : vector<8x256xf32>
      %c55 = arith.constant 55 : index
      %222 = memref.load %arg3[%c55] : memref<160xf32, #tpu.memory_space<smem>>
      %223 = vector.broadcast %222 : f32 to vector<8x256xf32>
      %224 = arith.mulf %7, %223 : vector<8x256xf32>
      %c56 = arith.constant 56 : index
      %225 = memref.load %arg3[%c56] : memref<160xf32, #tpu.memory_space<smem>>
      %226 = vector.broadcast %225 : f32 to vector<8x256xf32>
      %227 = arith.mulf %9, %226 : vector<8x256xf32>
      %228 = arith.addf %224, %227 : vector<8x256xf32>
      %c57 = arith.constant 57 : index
      %229 = memref.load %arg3[%c57] : memref<160xf32, #tpu.memory_space<smem>>
      %230 = vector.broadcast %229 : f32 to vector<8x256xf32>
      %231 = arith.mulf %11, %230 : vector<8x256xf32>
      %232 = arith.addf %228, %231 : vector<8x256xf32>
      %c58 = arith.constant 58 : index
      %233 = memref.load %arg3[%c58] : memref<160xf32, #tpu.memory_space<smem>>
      %234 = vector.broadcast %233 : f32 to vector<8x256xf32>
      %235 = arith.mulf %13, %234 : vector<8x256xf32>
      %236 = arith.addf %232, %235 : vector<8x256xf32>
      %c59 = arith.constant 59 : index
      %237 = memref.load %arg3[%c59] : memref<160xf32, #tpu.memory_space<smem>>
      %238 = vector.broadcast %237 : f32 to vector<8x256xf32>
      %239 = arith.addf %236, %238 : vector<8x256xf32>
      %240 = arith.maximumf %221, %239 : vector<8x256xf32>
      %c60 = arith.constant 60 : index
      %241 = memref.load %arg3[%c60] : memref<160xf32, #tpu.memory_space<smem>>
      %242 = vector.broadcast %241 : f32 to vector<8x256xf32>
      %243 = arith.mulf %7, %242 : vector<8x256xf32>
      %c61 = arith.constant 61 : index
      %244 = memref.load %arg3[%c61] : memref<160xf32, #tpu.memory_space<smem>>
      %245 = vector.broadcast %244 : f32 to vector<8x256xf32>
      %246 = arith.mulf %9, %245 : vector<8x256xf32>
      %247 = arith.addf %243, %246 : vector<8x256xf32>
      %c62 = arith.constant 62 : index
      %248 = memref.load %arg3[%c62] : memref<160xf32, #tpu.memory_space<smem>>
      %249 = vector.broadcast %248 : f32 to vector<8x256xf32>
      %250 = arith.mulf %11, %249 : vector<8x256xf32>
      %251 = arith.addf %247, %250 : vector<8x256xf32>
      %c63 = arith.constant 63 : index
      %252 = memref.load %arg3[%c63] : memref<160xf32, #tpu.memory_space<smem>>
      %253 = vector.broadcast %252 : f32 to vector<8x256xf32>
      %254 = arith.mulf %13, %253 : vector<8x256xf32>
      %255 = arith.addf %251, %254 : vector<8x256xf32>
      %c64 = arith.constant 64 : index
      %256 = memref.load %arg3[%c64] : memref<160xf32, #tpu.memory_space<smem>>
      %257 = vector.broadcast %256 : f32 to vector<8x256xf32>
      %258 = arith.addf %255, %257 : vector<8x256xf32>
      %259 = arith.maximumf %240, %258 : vector<8x256xf32>
      %c65 = arith.constant 65 : index
      %260 = memref.load %arg3[%c65] : memref<160xf32, #tpu.memory_space<smem>>
      %261 = vector.broadcast %260 : f32 to vector<8x256xf32>
      %262 = arith.mulf %7, %261 : vector<8x256xf32>
      %c66 = arith.constant 66 : index
      %263 = memref.load %arg3[%c66] : memref<160xf32, #tpu.memory_space<smem>>
      %264 = vector.broadcast %263 : f32 to vector<8x256xf32>
      %265 = arith.mulf %9, %264 : vector<8x256xf32>
      %266 = arith.addf %262, %265 : vector<8x256xf32>
      %c67 = arith.constant 67 : index
      %267 = memref.load %arg3[%c67] : memref<160xf32, #tpu.memory_space<smem>>
      %268 = vector.broadcast %267 : f32 to vector<8x256xf32>
      %269 = arith.mulf %11, %268 : vector<8x256xf32>
      %270 = arith.addf %266, %269 : vector<8x256xf32>
      %c68 = arith.constant 68 : index
      %271 = memref.load %arg3[%c68] : memref<160xf32, #tpu.memory_space<smem>>
      %272 = vector.broadcast %271 : f32 to vector<8x256xf32>
      %273 = arith.mulf %13, %272 : vector<8x256xf32>
      %274 = arith.addf %270, %273 : vector<8x256xf32>
      %c69 = arith.constant 69 : index
      %275 = memref.load %arg3[%c69] : memref<160xf32, #tpu.memory_space<smem>>
      %276 = vector.broadcast %275 : f32 to vector<8x256xf32>
      %277 = arith.addf %274, %276 : vector<8x256xf32>
      %278 = arith.maximumf %259, %277 : vector<8x256xf32>
      %c70 = arith.constant 70 : index
      %279 = memref.load %arg3[%c70] : memref<160xf32, #tpu.memory_space<smem>>
      %280 = vector.broadcast %279 : f32 to vector<8x256xf32>
      %281 = arith.mulf %7, %280 : vector<8x256xf32>
      %c71 = arith.constant 71 : index
      %282 = memref.load %arg3[%c71] : memref<160xf32, #tpu.memory_space<smem>>
      %283 = vector.broadcast %282 : f32 to vector<8x256xf32>
      %284 = arith.mulf %9, %283 : vector<8x256xf32>
      %285 = arith.addf %281, %284 : vector<8x256xf32>
      %c72 = arith.constant 72 : index
      %286 = memref.load %arg3[%c72] : memref<160xf32, #tpu.memory_space<smem>>
      %287 = vector.broadcast %286 : f32 to vector<8x256xf32>
      %288 = arith.mulf %11, %287 : vector<8x256xf32>
      %289 = arith.addf %285, %288 : vector<8x256xf32>
      %c73 = arith.constant 73 : index
      %290 = memref.load %arg3[%c73] : memref<160xf32, #tpu.memory_space<smem>>
      %291 = vector.broadcast %290 : f32 to vector<8x256xf32>
      %292 = arith.mulf %13, %291 : vector<8x256xf32>
      %293 = arith.addf %289, %292 : vector<8x256xf32>
      %c74 = arith.constant 74 : index
      %294 = memref.load %arg3[%c74] : memref<160xf32, #tpu.memory_space<smem>>
      %295 = vector.broadcast %294 : f32 to vector<8x256xf32>
      %296 = arith.addf %293, %295 : vector<8x256xf32>
      %297 = arith.maximumf %278, %296 : vector<8x256xf32>
      %c75 = arith.constant 75 : index
      %298 = memref.load %arg3[%c75] : memref<160xf32, #tpu.memory_space<smem>>
      %299 = vector.broadcast %298 : f32 to vector<8x256xf32>
      %300 = arith.mulf %7, %299 : vector<8x256xf32>
      %c76 = arith.constant 76 : index
      %301 = memref.load %arg3[%c76] : memref<160xf32, #tpu.memory_space<smem>>
      %302 = vector.broadcast %301 : f32 to vector<8x256xf32>
      %303 = arith.mulf %9, %302 : vector<8x256xf32>
      %304 = arith.addf %300, %303 : vector<8x256xf32>
      %c77 = arith.constant 77 : index
      %305 = memref.load %arg3[%c77] : memref<160xf32, #tpu.memory_space<smem>>
      %306 = vector.broadcast %305 : f32 to vector<8x256xf32>
      %307 = arith.mulf %11, %306 : vector<8x256xf32>
      %308 = arith.addf %304, %307 : vector<8x256xf32>
      %c78 = arith.constant 78 : index
      %309 = memref.load %arg3[%c78] : memref<160xf32, #tpu.memory_space<smem>>
      %310 = vector.broadcast %309 : f32 to vector<8x256xf32>
      %311 = arith.mulf %13, %310 : vector<8x256xf32>
      %312 = arith.addf %308, %311 : vector<8x256xf32>
      %c79 = arith.constant 79 : index
      %313 = memref.load %arg3[%c79] : memref<160xf32, #tpu.memory_space<smem>>
      %314 = vector.broadcast %313 : f32 to vector<8x256xf32>
      %315 = arith.addf %312, %314 : vector<8x256xf32>
      %316 = arith.maximumf %297, %315 : vector<8x256xf32>
      %c80 = arith.constant 80 : index
      %317 = memref.load %arg3[%c80] : memref<160xf32, #tpu.memory_space<smem>>
      %318 = vector.broadcast %317 : f32 to vector<8x256xf32>
      %319 = arith.mulf %7, %318 : vector<8x256xf32>
      %c81 = arith.constant 81 : index
      %320 = memref.load %arg3[%c81] : memref<160xf32, #tpu.memory_space<smem>>
      %321 = vector.broadcast %320 : f32 to vector<8x256xf32>
      %322 = arith.mulf %9, %321 : vector<8x256xf32>
      %323 = arith.addf %319, %322 : vector<8x256xf32>
      %c82 = arith.constant 82 : index
      %324 = memref.load %arg3[%c82] : memref<160xf32, #tpu.memory_space<smem>>
      %325 = vector.broadcast %324 : f32 to vector<8x256xf32>
      %326 = arith.mulf %11, %325 : vector<8x256xf32>
      %327 = arith.addf %323, %326 : vector<8x256xf32>
      %c83 = arith.constant 83 : index
      %328 = memref.load %arg3[%c83] : memref<160xf32, #tpu.memory_space<smem>>
      %329 = vector.broadcast %328 : f32 to vector<8x256xf32>
      %330 = arith.mulf %13, %329 : vector<8x256xf32>
      %331 = arith.addf %327, %330 : vector<8x256xf32>
      %c84 = arith.constant 84 : index
      %332 = memref.load %arg3[%c84] : memref<160xf32, #tpu.memory_space<smem>>
      %333 = vector.broadcast %332 : f32 to vector<8x256xf32>
      %334 = arith.addf %331, %333 : vector<8x256xf32>
      %335 = arith.maximumf %316, %334 : vector<8x256xf32>
      %c85 = arith.constant 85 : index
      %336 = memref.load %arg3[%c85] : memref<160xf32, #tpu.memory_space<smem>>
      %337 = vector.broadcast %336 : f32 to vector<8x256xf32>
      %338 = arith.mulf %7, %337 : vector<8x256xf32>
      %c86 = arith.constant 86 : index
      %339 = memref.load %arg3[%c86] : memref<160xf32, #tpu.memory_space<smem>>
      %340 = vector.broadcast %339 : f32 to vector<8x256xf32>
      %341 = arith.mulf %9, %340 : vector<8x256xf32>
      %342 = arith.addf %338, %341 : vector<8x256xf32>
      %c87 = arith.constant 87 : index
      %343 = memref.load %arg3[%c87] : memref<160xf32, #tpu.memory_space<smem>>
      %344 = vector.broadcast %343 : f32 to vector<8x256xf32>
      %345 = arith.mulf %11, %344 : vector<8x256xf32>
      %346 = arith.addf %342, %345 : vector<8x256xf32>
      %c88 = arith.constant 88 : index
      %347 = memref.load %arg3[%c88] : memref<160xf32, #tpu.memory_space<smem>>
      %348 = vector.broadcast %347 : f32 to vector<8x256xf32>
      %349 = arith.mulf %13, %348 : vector<8x256xf32>
      %350 = arith.addf %346, %349 : vector<8x256xf32>
      %c89 = arith.constant 89 : index
      %351 = memref.load %arg3[%c89] : memref<160xf32, #tpu.memory_space<smem>>
      %352 = vector.broadcast %351 : f32 to vector<8x256xf32>
      %353 = arith.addf %350, %352 : vector<8x256xf32>
      %354 = arith.maximumf %335, %353 : vector<8x256xf32>
      %c90 = arith.constant 90 : index
      %355 = memref.load %arg3[%c90] : memref<160xf32, #tpu.memory_space<smem>>
      %356 = vector.broadcast %355 : f32 to vector<8x256xf32>
      %357 = arith.mulf %7, %356 : vector<8x256xf32>
      %c91 = arith.constant 91 : index
      %358 = memref.load %arg3[%c91] : memref<160xf32, #tpu.memory_space<smem>>
      %359 = vector.broadcast %358 : f32 to vector<8x256xf32>
      %360 = arith.mulf %9, %359 : vector<8x256xf32>
      %361 = arith.addf %357, %360 : vector<8x256xf32>
      %c92 = arith.constant 92 : index
      %362 = memref.load %arg3[%c92] : memref<160xf32, #tpu.memory_space<smem>>
      %363 = vector.broadcast %362 : f32 to vector<8x256xf32>
      %364 = arith.mulf %11, %363 : vector<8x256xf32>
      %365 = arith.addf %361, %364 : vector<8x256xf32>
      %c93 = arith.constant 93 : index
      %366 = memref.load %arg3[%c93] : memref<160xf32, #tpu.memory_space<smem>>
      %367 = vector.broadcast %366 : f32 to vector<8x256xf32>
      %368 = arith.mulf %13, %367 : vector<8x256xf32>
      %369 = arith.addf %365, %368 : vector<8x256xf32>
      %c94 = arith.constant 94 : index
      %370 = memref.load %arg3[%c94] : memref<160xf32, #tpu.memory_space<smem>>
      %371 = vector.broadcast %370 : f32 to vector<8x256xf32>
      %372 = arith.addf %369, %371 : vector<8x256xf32>
      %373 = arith.maximumf %354, %372 : vector<8x256xf32>
      %c95 = arith.constant 95 : index
      %374 = memref.load %arg3[%c95] : memref<160xf32, #tpu.memory_space<smem>>
      %375 = vector.broadcast %374 : f32 to vector<8x256xf32>
      %376 = arith.mulf %7, %375 : vector<8x256xf32>
      %c96 = arith.constant 96 : index
      %377 = memref.load %arg3[%c96] : memref<160xf32, #tpu.memory_space<smem>>
      %378 = vector.broadcast %377 : f32 to vector<8x256xf32>
      %379 = arith.mulf %9, %378 : vector<8x256xf32>
      %380 = arith.addf %376, %379 : vector<8x256xf32>
      %c97 = arith.constant 97 : index
      %381 = memref.load %arg3[%c97] : memref<160xf32, #tpu.memory_space<smem>>
      %382 = vector.broadcast %381 : f32 to vector<8x256xf32>
      %383 = arith.mulf %11, %382 : vector<8x256xf32>
      %384 = arith.addf %380, %383 : vector<8x256xf32>
      %c98 = arith.constant 98 : index
      %385 = memref.load %arg3[%c98] : memref<160xf32, #tpu.memory_space<smem>>
      %386 = vector.broadcast %385 : f32 to vector<8x256xf32>
      %387 = arith.mulf %13, %386 : vector<8x256xf32>
      %388 = arith.addf %384, %387 : vector<8x256xf32>
      %c99 = arith.constant 99 : index
      %389 = memref.load %arg3[%c99] : memref<160xf32, #tpu.memory_space<smem>>
      %390 = vector.broadcast %389 : f32 to vector<8x256xf32>
      %391 = arith.addf %388, %390 : vector<8x256xf32>
      %392 = arith.maximumf %373, %391 : vector<8x256xf32>
      %c100 = arith.constant 100 : index
      %393 = memref.load %arg3[%c100] : memref<160xf32, #tpu.memory_space<smem>>
      %394 = vector.broadcast %393 : f32 to vector<8x256xf32>
      %395 = arith.mulf %7, %394 : vector<8x256xf32>
      %c101 = arith.constant 101 : index
      %396 = memref.load %arg3[%c101] : memref<160xf32, #tpu.memory_space<smem>>
      %397 = vector.broadcast %396 : f32 to vector<8x256xf32>
      %398 = arith.mulf %9, %397 : vector<8x256xf32>
      %399 = arith.addf %395, %398 : vector<8x256xf32>
      %c102 = arith.constant 102 : index
      %400 = memref.load %arg3[%c102] : memref<160xf32, #tpu.memory_space<smem>>
      %401 = vector.broadcast %400 : f32 to vector<8x256xf32>
      %402 = arith.mulf %11, %401 : vector<8x256xf32>
      %403 = arith.addf %399, %402 : vector<8x256xf32>
      %c103 = arith.constant 103 : index
      %404 = memref.load %arg3[%c103] : memref<160xf32, #tpu.memory_space<smem>>
      %405 = vector.broadcast %404 : f32 to vector<8x256xf32>
      %406 = arith.mulf %13, %405 : vector<8x256xf32>
      %407 = arith.addf %403, %406 : vector<8x256xf32>
      %c104 = arith.constant 104 : index
      %408 = memref.load %arg3[%c104] : memref<160xf32, #tpu.memory_space<smem>>
      %409 = vector.broadcast %408 : f32 to vector<8x256xf32>
      %410 = arith.addf %407, %409 : vector<8x256xf32>
      %411 = arith.maximumf %392, %410 : vector<8x256xf32>
      %c105 = arith.constant 105 : index
      %412 = memref.load %arg3[%c105] : memref<160xf32, #tpu.memory_space<smem>>
      %413 = vector.broadcast %412 : f32 to vector<8x256xf32>
      %414 = arith.mulf %7, %413 : vector<8x256xf32>
      %c106 = arith.constant 106 : index
      %415 = memref.load %arg3[%c106] : memref<160xf32, #tpu.memory_space<smem>>
      %416 = vector.broadcast %415 : f32 to vector<8x256xf32>
      %417 = arith.mulf %9, %416 : vector<8x256xf32>
      %418 = arith.addf %414, %417 : vector<8x256xf32>
      %c107 = arith.constant 107 : index
      %419 = memref.load %arg3[%c107] : memref<160xf32, #tpu.memory_space<smem>>
      %420 = vector.broadcast %419 : f32 to vector<8x256xf32>
      %421 = arith.mulf %11, %420 : vector<8x256xf32>
      %422 = arith.addf %418, %421 : vector<8x256xf32>
      %c108 = arith.constant 108 : index
      %423 = memref.load %arg3[%c108] : memref<160xf32, #tpu.memory_space<smem>>
      %424 = vector.broadcast %423 : f32 to vector<8x256xf32>
      %425 = arith.mulf %13, %424 : vector<8x256xf32>
      %426 = arith.addf %422, %425 : vector<8x256xf32>
      %c109 = arith.constant 109 : index
      %427 = memref.load %arg3[%c109] : memref<160xf32, #tpu.memory_space<smem>>
      %428 = vector.broadcast %427 : f32 to vector<8x256xf32>
      %429 = arith.addf %426, %428 : vector<8x256xf32>
      %430 = arith.maximumf %411, %429 : vector<8x256xf32>
      %c110 = arith.constant 110 : index
      %431 = memref.load %arg3[%c110] : memref<160xf32, #tpu.memory_space<smem>>
      %432 = vector.broadcast %431 : f32 to vector<8x256xf32>
      %433 = arith.mulf %7, %432 : vector<8x256xf32>
      %c111 = arith.constant 111 : index
      %434 = memref.load %arg3[%c111] : memref<160xf32, #tpu.memory_space<smem>>
      %435 = vector.broadcast %434 : f32 to vector<8x256xf32>
      %436 = arith.mulf %9, %435 : vector<8x256xf32>
      %437 = arith.addf %433, %436 : vector<8x256xf32>
      %c112 = arith.constant 112 : index
      %438 = memref.load %arg3[%c112] : memref<160xf32, #tpu.memory_space<smem>>
      %439 = vector.broadcast %438 : f32 to vector<8x256xf32>
      %440 = arith.mulf %11, %439 : vector<8x256xf32>
      %441 = arith.addf %437, %440 : vector<8x256xf32>
      %c113 = arith.constant 113 : index
      %442 = memref.load %arg3[%c113] : memref<160xf32, #tpu.memory_space<smem>>
      %443 = vector.broadcast %442 : f32 to vector<8x256xf32>
      %444 = arith.mulf %13, %443 : vector<8x256xf32>
      %445 = arith.addf %441, %444 : vector<8x256xf32>
      %c114 = arith.constant 114 : index
      %446 = memref.load %arg3[%c114] : memref<160xf32, #tpu.memory_space<smem>>
      %447 = vector.broadcast %446 : f32 to vector<8x256xf32>
      %448 = arith.addf %445, %447 : vector<8x256xf32>
      %449 = arith.maximumf %430, %448 : vector<8x256xf32>
      %c115 = arith.constant 115 : index
      %450 = memref.load %arg3[%c115] : memref<160xf32, #tpu.memory_space<smem>>
      %451 = vector.broadcast %450 : f32 to vector<8x256xf32>
      %452 = arith.mulf %7, %451 : vector<8x256xf32>
      %c116 = arith.constant 116 : index
      %453 = memref.load %arg3[%c116] : memref<160xf32, #tpu.memory_space<smem>>
      %454 = vector.broadcast %453 : f32 to vector<8x256xf32>
      %455 = arith.mulf %9, %454 : vector<8x256xf32>
      %456 = arith.addf %452, %455 : vector<8x256xf32>
      %c117 = arith.constant 117 : index
      %457 = memref.load %arg3[%c117] : memref<160xf32, #tpu.memory_space<smem>>
      %458 = vector.broadcast %457 : f32 to vector<8x256xf32>
      %459 = arith.mulf %11, %458 : vector<8x256xf32>
      %460 = arith.addf %456, %459 : vector<8x256xf32>
      %c118 = arith.constant 118 : index
      %461 = memref.load %arg3[%c118] : memref<160xf32, #tpu.memory_space<smem>>
      %462 = vector.broadcast %461 : f32 to vector<8x256xf32>
      %463 = arith.mulf %13, %462 : vector<8x256xf32>
      %464 = arith.addf %460, %463 : vector<8x256xf32>
      %c119 = arith.constant 119 : index
      %465 = memref.load %arg3[%c119] : memref<160xf32, #tpu.memory_space<smem>>
      %466 = vector.broadcast %465 : f32 to vector<8x256xf32>
      %467 = arith.addf %464, %466 : vector<8x256xf32>
      %468 = arith.maximumf %449, %467 : vector<8x256xf32>
      %c120 = arith.constant 120 : index
      %469 = memref.load %arg3[%c120] : memref<160xf32, #tpu.memory_space<smem>>
      %470 = vector.broadcast %469 : f32 to vector<8x256xf32>
      %471 = arith.mulf %7, %470 : vector<8x256xf32>
      %c121 = arith.constant 121 : index
      %472 = memref.load %arg3[%c121] : memref<160xf32, #tpu.memory_space<smem>>
      %473 = vector.broadcast %472 : f32 to vector<8x256xf32>
      %474 = arith.mulf %9, %473 : vector<8x256xf32>
      %475 = arith.addf %471, %474 : vector<8x256xf32>
      %c122 = arith.constant 122 : index
      %476 = memref.load %arg3[%c122] : memref<160xf32, #tpu.memory_space<smem>>
      %477 = vector.broadcast %476 : f32 to vector<8x256xf32>
      %478 = arith.mulf %11, %477 : vector<8x256xf32>
      %479 = arith.addf %475, %478 : vector<8x256xf32>
      %c123 = arith.constant 123 : index
      %480 = memref.load %arg3[%c123] : memref<160xf32, #tpu.memory_space<smem>>
      %481 = vector.broadcast %480 : f32 to vector<8x256xf32>
      %482 = arith.mulf %13, %481 : vector<8x256xf32>
      %483 = arith.addf %479, %482 : vector<8x256xf32>
      %c124 = arith.constant 124 : index
      %484 = memref.load %arg3[%c124] : memref<160xf32, #tpu.memory_space<smem>>
      %485 = vector.broadcast %484 : f32 to vector<8x256xf32>
      %486 = arith.addf %483, %485 : vector<8x256xf32>
      %487 = arith.maximumf %468, %486 : vector<8x256xf32>
      %c125 = arith.constant 125 : index
      %488 = memref.load %arg3[%c125] : memref<160xf32, #tpu.memory_space<smem>>
      %489 = vector.broadcast %488 : f32 to vector<8x256xf32>
      %490 = arith.mulf %7, %489 : vector<8x256xf32>
      %c126 = arith.constant 126 : index
      %491 = memref.load %arg3[%c126] : memref<160xf32, #tpu.memory_space<smem>>
      %492 = vector.broadcast %491 : f32 to vector<8x256xf32>
      %493 = arith.mulf %9, %492 : vector<8x256xf32>
      %494 = arith.addf %490, %493 : vector<8x256xf32>
      %c127 = arith.constant 127 : index
      %495 = memref.load %arg3[%c127] : memref<160xf32, #tpu.memory_space<smem>>
      %496 = vector.broadcast %495 : f32 to vector<8x256xf32>
      %497 = arith.mulf %11, %496 : vector<8x256xf32>
      %498 = arith.addf %494, %497 : vector<8x256xf32>
      %c128 = arith.constant 128 : index
      %499 = memref.load %arg3[%c128] : memref<160xf32, #tpu.memory_space<smem>>
      %500 = vector.broadcast %499 : f32 to vector<8x256xf32>
      %501 = arith.mulf %13, %500 : vector<8x256xf32>
      %502 = arith.addf %498, %501 : vector<8x256xf32>
      %c129 = arith.constant 129 : index
      %503 = memref.load %arg3[%c129] : memref<160xf32, #tpu.memory_space<smem>>
      %504 = vector.broadcast %503 : f32 to vector<8x256xf32>
      %505 = arith.addf %502, %504 : vector<8x256xf32>
      %506 = arith.maximumf %487, %505 : vector<8x256xf32>
      %c130 = arith.constant 130 : index
      %507 = memref.load %arg3[%c130] : memref<160xf32, #tpu.memory_space<smem>>
      %508 = vector.broadcast %507 : f32 to vector<8x256xf32>
      %509 = arith.mulf %7, %508 : vector<8x256xf32>
      %c131 = arith.constant 131 : index
      %510 = memref.load %arg3[%c131] : memref<160xf32, #tpu.memory_space<smem>>
      %511 = vector.broadcast %510 : f32 to vector<8x256xf32>
      %512 = arith.mulf %9, %511 : vector<8x256xf32>
      %513 = arith.addf %509, %512 : vector<8x256xf32>
      %c132 = arith.constant 132 : index
      %514 = memref.load %arg3[%c132] : memref<160xf32, #tpu.memory_space<smem>>
      %515 = vector.broadcast %514 : f32 to vector<8x256xf32>
      %516 = arith.mulf %11, %515 : vector<8x256xf32>
      %517 = arith.addf %513, %516 : vector<8x256xf32>
      %c133 = arith.constant 133 : index
      %518 = memref.load %arg3[%c133] : memref<160xf32, #tpu.memory_space<smem>>
      %519 = vector.broadcast %518 : f32 to vector<8x256xf32>
      %520 = arith.mulf %13, %519 : vector<8x256xf32>
      %521 = arith.addf %517, %520 : vector<8x256xf32>
      %c134 = arith.constant 134 : index
      %522 = memref.load %arg3[%c134] : memref<160xf32, #tpu.memory_space<smem>>
      %523 = vector.broadcast %522 : f32 to vector<8x256xf32>
      %524 = arith.addf %521, %523 : vector<8x256xf32>
      %525 = arith.maximumf %506, %524 : vector<8x256xf32>
      %c135 = arith.constant 135 : index
      %526 = memref.load %arg3[%c135] : memref<160xf32, #tpu.memory_space<smem>>
      %527 = vector.broadcast %526 : f32 to vector<8x256xf32>
      %528 = arith.mulf %7, %527 : vector<8x256xf32>
      %c136 = arith.constant 136 : index
      %529 = memref.load %arg3[%c136] : memref<160xf32, #tpu.memory_space<smem>>
      %530 = vector.broadcast %529 : f32 to vector<8x256xf32>
      %531 = arith.mulf %9, %530 : vector<8x256xf32>
      %532 = arith.addf %528, %531 : vector<8x256xf32>
      %c137 = arith.constant 137 : index
      %533 = memref.load %arg3[%c137] : memref<160xf32, #tpu.memory_space<smem>>
      %534 = vector.broadcast %533 : f32 to vector<8x256xf32>
      %535 = arith.mulf %11, %534 : vector<8x256xf32>
      %536 = arith.addf %532, %535 : vector<8x256xf32>
      %c138 = arith.constant 138 : index
      %537 = memref.load %arg3[%c138] : memref<160xf32, #tpu.memory_space<smem>>
      %538 = vector.broadcast %537 : f32 to vector<8x256xf32>
      %539 = arith.mulf %13, %538 : vector<8x256xf32>
      %540 = arith.addf %536, %539 : vector<8x256xf32>
      %c139 = arith.constant 139 : index
      %541 = memref.load %arg3[%c139] : memref<160xf32, #tpu.memory_space<smem>>
      %542 = vector.broadcast %541 : f32 to vector<8x256xf32>
      %543 = arith.addf %540, %542 : vector<8x256xf32>
      %544 = arith.maximumf %525, %543 : vector<8x256xf32>
      %c140 = arith.constant 140 : index
      %545 = memref.load %arg3[%c140] : memref<160xf32, #tpu.memory_space<smem>>
      %546 = vector.broadcast %545 : f32 to vector<8x256xf32>
      %547 = arith.mulf %7, %546 : vector<8x256xf32>
      %c141 = arith.constant 141 : index
      %548 = memref.load %arg3[%c141] : memref<160xf32, #tpu.memory_space<smem>>
      %549 = vector.broadcast %548 : f32 to vector<8x256xf32>
      %550 = arith.mulf %9, %549 : vector<8x256xf32>
      %551 = arith.addf %547, %550 : vector<8x256xf32>
      %c142 = arith.constant 142 : index
      %552 = memref.load %arg3[%c142] : memref<160xf32, #tpu.memory_space<smem>>
      %553 = vector.broadcast %552 : f32 to vector<8x256xf32>
      %554 = arith.mulf %11, %553 : vector<8x256xf32>
      %555 = arith.addf %551, %554 : vector<8x256xf32>
      %c143 = arith.constant 143 : index
      %556 = memref.load %arg3[%c143] : memref<160xf32, #tpu.memory_space<smem>>
      %557 = vector.broadcast %556 : f32 to vector<8x256xf32>
      %558 = arith.mulf %13, %557 : vector<8x256xf32>
      %559 = arith.addf %555, %558 : vector<8x256xf32>
      %c144 = arith.constant 144 : index
      %560 = memref.load %arg3[%c144] : memref<160xf32, #tpu.memory_space<smem>>
      %561 = vector.broadcast %560 : f32 to vector<8x256xf32>
      %562 = arith.addf %559, %561 : vector<8x256xf32>
      %563 = arith.maximumf %544, %562 : vector<8x256xf32>
      %c145 = arith.constant 145 : index
      %564 = memref.load %arg3[%c145] : memref<160xf32, #tpu.memory_space<smem>>
      %565 = vector.broadcast %564 : f32 to vector<8x256xf32>
      %566 = arith.mulf %7, %565 : vector<8x256xf32>
      %c146 = arith.constant 146 : index
      %567 = memref.load %arg3[%c146] : memref<160xf32, #tpu.memory_space<smem>>
      %568 = vector.broadcast %567 : f32 to vector<8x256xf32>
      %569 = arith.mulf %9, %568 : vector<8x256xf32>
      %570 = arith.addf %566, %569 : vector<8x256xf32>
      %c147 = arith.constant 147 : index
      %571 = memref.load %arg3[%c147] : memref<160xf32, #tpu.memory_space<smem>>
      %572 = vector.broadcast %571 : f32 to vector<8x256xf32>
      %573 = arith.mulf %11, %572 : vector<8x256xf32>
      %574 = arith.addf %570, %573 : vector<8x256xf32>
      %c148 = arith.constant 148 : index
      %575 = memref.load %arg3[%c148] : memref<160xf32, #tpu.memory_space<smem>>
      %576 = vector.broadcast %575 : f32 to vector<8x256xf32>
      %577 = arith.mulf %13, %576 : vector<8x256xf32>
      %578 = arith.addf %574, %577 : vector<8x256xf32>
      %c149 = arith.constant 149 : index
      %579 = memref.load %arg3[%c149] : memref<160xf32, #tpu.memory_space<smem>>
      %580 = vector.broadcast %579 : f32 to vector<8x256xf32>
      %581 = arith.addf %578, %580 : vector<8x256xf32>
      %582 = arith.maximumf %563, %581 : vector<8x256xf32>
      %c150 = arith.constant 150 : index
      %583 = memref.load %arg3[%c150] : memref<160xf32, #tpu.memory_space<smem>>
      %584 = vector.broadcast %583 : f32 to vector<8x256xf32>
      %585 = arith.mulf %7, %584 : vector<8x256xf32>
      %c151 = arith.constant 151 : index
      %586 = memref.load %arg3[%c151] : memref<160xf32, #tpu.memory_space<smem>>
      %587 = vector.broadcast %586 : f32 to vector<8x256xf32>
      %588 = arith.mulf %9, %587 : vector<8x256xf32>
      %589 = arith.addf %585, %588 : vector<8x256xf32>
      %c152 = arith.constant 152 : index
      %590 = memref.load %arg3[%c152] : memref<160xf32, #tpu.memory_space<smem>>
      %591 = vector.broadcast %590 : f32 to vector<8x256xf32>
      %592 = arith.mulf %11, %591 : vector<8x256xf32>
      %593 = arith.addf %589, %592 : vector<8x256xf32>
      %c153 = arith.constant 153 : index
      %594 = memref.load %arg3[%c153] : memref<160xf32, #tpu.memory_space<smem>>
      %595 = vector.broadcast %594 : f32 to vector<8x256xf32>
      %596 = arith.mulf %13, %595 : vector<8x256xf32>
      %597 = arith.addf %593, %596 : vector<8x256xf32>
      %c154 = arith.constant 154 : index
      %598 = memref.load %arg3[%c154] : memref<160xf32, #tpu.memory_space<smem>>
      %599 = vector.broadcast %598 : f32 to vector<8x256xf32>
      %600 = arith.addf %597, %599 : vector<8x256xf32>
      %601 = arith.maximumf %582, %600 : vector<8x256xf32>
      %c155 = arith.constant 155 : index
      %602 = memref.load %arg3[%c155] : memref<160xf32, #tpu.memory_space<smem>>
      %603 = vector.broadcast %602 : f32 to vector<8x256xf32>
      %604 = arith.mulf %7, %603 : vector<8x256xf32>
      %c156 = arith.constant 156 : index
      %605 = memref.load %arg3[%c156] : memref<160xf32, #tpu.memory_space<smem>>
      %606 = vector.broadcast %605 : f32 to vector<8x256xf32>
      %607 = arith.mulf %9, %606 : vector<8x256xf32>
      %608 = arith.addf %604, %607 : vector<8x256xf32>
      %c157 = arith.constant 157 : index
      %609 = memref.load %arg3[%c157] : memref<160xf32, #tpu.memory_space<smem>>
      %610 = vector.broadcast %609 : f32 to vector<8x256xf32>
      %611 = arith.mulf %11, %610 : vector<8x256xf32>
      %612 = arith.addf %608, %611 : vector<8x256xf32>
      %c158 = arith.constant 158 : index
      %613 = memref.load %arg3[%c158] : memref<160xf32, #tpu.memory_space<smem>>
      %614 = vector.broadcast %613 : f32 to vector<8x256xf32>
      %615 = arith.mulf %13, %614 : vector<8x256xf32>
      %616 = arith.addf %612, %615 : vector<8x256xf32>
      %c159 = arith.constant 159 : index
      %617 = memref.load %arg3[%c159] : memref<160xf32, #tpu.memory_space<smem>>
      %618 = vector.broadcast %617 : f32 to vector<8x256xf32>
      %619 = arith.addf %616, %618 : vector<8x256xf32>
      %620 = arith.maximumf %601, %619 : vector<8x256xf32>
      %621 = arith.index_cast %5 : i32 to index
      %c0_5 = arith.constant 0 : index
      %622 = vector.load %arg4[%621, %c0_5] : memref<40x288xf32, #tpu.memory_space<vmem>>, vector<8x256xf32>
      tpu.vector_store %arg4[%621, %c0_5], %620 {strides = array<i32>} : memref<40x288xf32, #tpu.memory_space<vmem>>, vector<8x256xf32>,
      %cst_6 = arith.constant dense<0.000000e+00> : vector<8xf32>
      %623 = vector.multi_reduction <add>, %7, %cst_6 [1] : vector<8x256xf32> to vector<8xf32>
      %624 = vector.shape_cast %623 : vector<8xf32> to vector<8x1xf32>
      %cst_7 = arith.constant dense<0.000000e+00> : vector<8xf32>
      %625 = vector.multi_reduction <add>, %9, %cst_7 [1] : vector<8x256xf32> to vector<8xf32>
      %626 = vector.shape_cast %625 : vector<8xf32> to vector<8x1xf32>
      %cst_8 = arith.constant dense<0.000000e+00> : vector<8xf32>
      %627 = vector.multi_reduction <add>, %11, %cst_8 [1] : vector<8x256xf32> to vector<8xf32>
      %628 = vector.shape_cast %627 : vector<8xf32> to vector<8x1xf32>
      %cst_9 = arith.constant dense<0.000000e+00> : vector<8xf32>
      %629 = vector.multi_reduction <add>, %13, %cst_9 [1] : vector<8x256xf32> to vector<8xf32>
      %630 = vector.shape_cast %629 : vector<8xf32> to vector<8x1xf32>
      %c11_10 = arith.constant 11 : index
      %c0_11 = arith.constant 0 : index
      %631 = vector.load %arg2[%c11_10, %c0_11] : memref<12x32xf32, #tpu.memory_space<vmem>>, vector<1x32xf32>
      %632 = vector.shape_cast %631 : vector<1x32xf32> to vector<32xf32>
      %633 = vector.shape_cast %632 : vector<32xf32> to vector<1x32xf32>
      %634 = vector.shape_cast %633 : vector<1x32xf32> to vector<1x32xf32>
      %635 = vector.broadcast %634 : vector<1x32xf32> to vector<8x32xf32>
      %636 = arith.mulf %7, %11 : vector<8x256xf32>
      %cst_12 = arith.constant dense<0.000000e+00> : vector<8xf32>
      %637 = vector.multi_reduction <add>, %636, %cst_12 [1] : vector<8x256xf32> to vector<8xf32>
      %638 = vector.shape_cast %637 : vector<8xf32> to vector<8x1xf32>
      %c0_13 = arith.constant 0 : index
      %c0_14 = arith.constant 0 : index
      %639 = vector.load %arg2[%c0_13, %c0_14] : memref<12x32xf32, #tpu.memory_space<vmem>>, vector<1x32xf32>
      %640 = vector.shape_cast %639 : vector<1x32xf32> to vector<32xf32>
      %641 = vector.shape_cast %640 : vector<32xf32> to vector<1x32xf32>
      %642 = vector.broadcast %638 : vector<8x1xf32> to vector<8x32xf32>
      %643 = vector.broadcast %641 : vector<1x32xf32> to vector<8x32xf32>
      %644 = arith.mulf %642, %643 : vector<8x32xf32>
      %645 = arith.addf %635, %644 : vector<8x32xf32>
      %646 = arith.mulf %7, %13 : vector<8x256xf32>
      %cst_15 = arith.constant dense<0.000000e+00> : vector<8xf32>
      %647 = vector.multi_reduction <add>, %646, %cst_15 [1] : vector<8x256xf32> to vector<8xf32>
      %648 = vector.shape_cast %647 : vector<8xf32> to vector<8x1xf32>
      %c1_16 = arith.constant 1 : index
      %c0_17 = arith.constant 0 : index
      %649 = vector.load %arg2[%c1_16, %c0_17] : memref<12x32xf32, #tpu.memory_space<vmem>>, vector<1x32xf32>
      %650 = vector.shape_cast %649 : vector<1x32xf32> to vector<32xf32>
      %651 = vector.shape_cast %650 : vector<32xf32> to vector<1x32xf32>
      %652 = vector.broadcast %648 : vector<8x1xf32> to vector<8x32xf32>
      %653 = vector.broadcast %651 : vector<1x32xf32> to vector<8x32xf32>
      %654 = arith.mulf %652, %653 : vector<8x32xf32>
      %655 = arith.addf %645, %654 : vector<8x32xf32>
      %c4_18 = arith.constant 4 : index
      %c0_19 = arith.constant 0 : index
      %656 = vector.load %arg2[%c4_18, %c0_19] : memref<12x32xf32, #tpu.memory_space<vmem>>, vector<1x32xf32>
      %657 = vector.shape_cast %656 : vector<1x32xf32> to vector<32xf32>
      %658 = vector.shape_cast %657 : vector<32xf32> to vector<1x32xf32>
      %659 = arith.mulf %7, %7 : vector<8x256xf32>
      %cst_20 = arith.constant dense<0.000000e+00> : vector<8xf32>
      %660 = vector.multi_reduction <add>, %659, %cst_20 [1] : vector<8x256xf32> to vector<8xf32>
      %661 = vector.shape_cast %660 : vector<8xf32> to vector<8x1xf32>
      %662 = vector.broadcast %661 : vector<8x1xf32> to vector<8x32xf32>
      %663 = vector.broadcast %658 : vector<1x32xf32> to vector<8x32xf32>
      %664 = arith.mulf %662, %663 : vector<8x32xf32>
      %665 = arith.addf %635, %664 : vector<8x32xf32>
      %666 = arith.mulf %11, %11 : vector<8x256xf32>
      %cst_21 = arith.constant dense<0.000000e+00> : vector<8xf32>
      %667 = vector.multi_reduction <add>, %666, %cst_21 [1] : vector<8x256xf32> to vector<8xf32>
      %668 = vector.shape_cast %667 : vector<8xf32> to vector<8x1xf32>
      %669 = vector.broadcast %668 : vector<8x1xf32> to vector<8x32xf32>
      %670 = vector.broadcast %658 : vector<1x32xf32> to vector<8x32xf32>
      %671 = arith.mulf %669, %670 : vector<8x32xf32>
      %672 = arith.addf %635, %671 : vector<8x32xf32>
      %c5_22 = arith.constant 5 : index
      %c0_23 = arith.constant 0 : index
      %673 = vector.load %arg2[%c5_22, %c0_23] : memref<12x32xf32, #tpu.memory_space<vmem>>, vector<1x32xf32>
      %674 = vector.shape_cast %673 : vector<1x32xf32> to vector<32xf32>
      %675 = vector.shape_cast %674 : vector<32xf32> to vector<1x32xf32>
      %676 = arith.mulf %7, %9 : vector<8x256xf32>
      %cst_24 = arith.constant dense<0.000000e+00> : vector<8xf32>
      %677 = vector.multi_reduction <add>, %676, %cst_24 [1] : vector<8x256xf32> to vector<8xf32>
      %678 = vector.shape_cast %677 : vector<8xf32> to vector<8x1xf32>
      %679 = vector.broadcast %678 : vector<8x1xf32> to vector<8x32xf32>
      %680 = vector.broadcast %675 : vector<1x32xf32> to vector<8x32xf32>
      %681 = arith.mulf %679, %680 : vector<8x32xf32>
      %682 = arith.addf %665, %681 : vector<8x32xf32>
      %683 = arith.mulf %11, %13 : vector<8x256xf32>
      %cst_25 = arith.constant dense<0.000000e+00> : vector<8xf32>
      %684 = vector.multi_reduction <add>, %683, %cst_25 [1] : vector<8x256xf32> to vector<8xf32>
      %685 = vector.shape_cast %684 : vector<8xf32> to vector<8x1xf32>
      %686 = vector.broadcast %685 : vector<8x1xf32> to vector<8x32xf32>
      %687 = vector.broadcast %675 : vector<1x32xf32> to vector<8x32xf32>
      %688 = arith.mulf %686, %687 : vector<8x32xf32>
      %689 = arith.addf %672, %688 : vector<8x32xf32>
      %c7_26 = arith.constant 7 : index
      %c0_27 = arith.constant 0 : index
      %690 = vector.load %arg2[%c7_26, %c0_27] : memref<12x32xf32, #tpu.memory_space<vmem>>, vector<1x32xf32>
      %691 = vector.shape_cast %690 : vector<1x32xf32> to vector<32xf32>
      %692 = vector.shape_cast %691 : vector<32xf32> to vector<1x32xf32>
      %c9_28 = arith.constant 9 : index
      %c0_29 = arith.constant 0 : index
      %693 = vector.load %arg2[%c9_28, %c0_29] : memref<12x32xf32, #tpu.memory_space<vmem>>, vector<1x32xf32>
      %694 = vector.shape_cast %693 : vector<1x32xf32> to vector<32xf32>
      %695 = vector.shape_cast %694 : vector<32xf32> to vector<1x32xf32>
      %696 = arith.addf %624, %628 : vector<8x1xf32>
      %697 = vector.broadcast %696 : vector<8x1xf32> to vector<8x32xf32>
      %698 = vector.broadcast %692 : vector<1x32xf32> to vector<8x32xf32>
      %699 = arith.mulf %697, %698 : vector<8x32xf32>
      %700 = arith.addf %655, %699 : vector<8x32xf32>
      %701 = vector.broadcast %624 : vector<8x1xf32> to vector<8x32xf32>
      %702 = vector.broadcast %695 : vector<1x32xf32> to vector<8x32xf32>
      %703 = arith.mulf %701, %702 : vector<8x32xf32>
      %704 = arith.addf %682, %703 : vector<8x32xf32>
      %705 = vector.broadcast %628 : vector<8x1xf32> to vector<8x32xf32>
      %706 = vector.broadcast %695 : vector<1x32xf32> to vector<8x32xf32>
      %707 = arith.mulf %705, %706 : vector<8x32xf32>
      %708 = arith.addf %689, %707 : vector<8x32xf32>
      %709 = arith.mulf %9, %11 : vector<8x256xf32>
      %cst_30 = arith.constant dense<0.000000e+00> : vector<8xf32>
      %710 = vector.multi_reduction <add>, %709, %cst_30 [1] : vector<8x256xf32> to vector<8xf32>
      %711 = vector.shape_cast %710 : vector<8xf32> to vector<8x1xf32>
      %c2_31 = arith.constant 2 : index
      %c0_32 = arith.constant 0 : index
      %712 = vector.load %arg2[%c2_31, %c0_32] : memref<12x32xf32, #tpu.memory_space<vmem>>, vector<1x32xf32>
      %713 = vector.shape_cast %712 : vector<1x32xf32> to vector<32xf32>
      %714 = vector.shape_cast %713 : vector<32xf32> to vector<1x32xf32>
      %715 = vector.broadcast %711 : vector<8x1xf32> to vector<8x32xf32>
      %716 = vector.broadcast %714 : vector<1x32xf32> to vector<8x32xf32>
      %717 = arith.mulf %715, %716 : vector<8x32xf32>
      %718 = arith.addf %700, %717 : vector<8x32xf32>
      %719 = arith.mulf %9, %13 : vector<8x256xf32>
      %cst_33 = arith.constant dense<0.000000e+00> : vector<8xf32>
      %720 = vector.multi_reduction <add>, %719, %cst_33 [1] : vector<8x256xf32> to vector<8xf32>
      %721 = vector.shape_cast %720 : vector<8xf32> to vector<8x1xf32>
      %c3_34 = arith.constant 3 : index
      %c0_35 = arith.constant 0 : index
      %722 = vector.load %arg2[%c3_34, %c0_35] : memref<12x32xf32, #tpu.memory_space<vmem>>, vector<1x32xf32>
      %723 = vector.shape_cast %722 : vector<1x32xf32> to vector<32xf32>
      %724 = vector.shape_cast %723 : vector<32xf32> to vector<1x32xf32>
      %725 = vector.broadcast %721 : vector<8x1xf32> to vector<8x32xf32>
      %726 = vector.broadcast %724 : vector<1x32xf32> to vector<8x32xf32>
      %727 = arith.mulf %725, %726 : vector<8x32xf32>
      %728 = arith.addf %718, %727 : vector<8x32xf32>
      %c6_36 = arith.constant 6 : index
      %c0_37 = arith.constant 0 : index
      %729 = vector.load %arg2[%c6_36, %c0_37] : memref<12x32xf32, #tpu.memory_space<vmem>>, vector<1x32xf32>
      %730 = vector.shape_cast %729 : vector<1x32xf32> to vector<32xf32>
      %731 = vector.shape_cast %730 : vector<32xf32> to vector<1x32xf32>
      %732 = arith.mulf %9, %9 : vector<8x256xf32>
      %cst_38 = arith.constant dense<0.000000e+00> : vector<8xf32>
      %733 = vector.multi_reduction <add>, %732, %cst_38 [1] : vector<8x256xf32> to vector<8xf32>
      %734 = vector.shape_cast %733 : vector<8xf32> to vector<8x1xf32>
      %735 = vector.broadcast %734 : vector<8x1xf32> to vector<8x32xf32>
      %736 = vector.broadcast %731 : vector<1x32xf32> to vector<8x32xf32>
      %737 = arith.mulf %735, %736 : vector<8x32xf32>
      %738 = arith.addf %704, %737 : vector<8x32xf32>
      %739 = arith.mulf %13, %13 : vector<8x256xf32>
      %cst_39 = arith.constant dense<0.000000e+00> : vector<8xf32>
      %740 = vector.multi_reduction <add>, %739, %cst_39 [1] : vector<8x256xf32> to vector<8xf32>
      %741 = vector.shape_cast %740 : vector<8xf32> to vector<8x1xf32>
      %742 = vector.broadcast %741 : vector<8x1xf32> to vector<8x32xf32>
      %743 = vector.broadcast %731 : vector<1x32xf32> to vector<8x32xf32>
      %744 = arith.mulf %742, %743 : vector<8x32xf32>
      %745 = arith.addf %708, %744 : vector<8x32xf32>
      %c8_40 = arith.constant 8 : index
      %c0_41 = arith.constant 0 : index
      %746 = vector.load %arg2[%c8_40, %c0_41] : memref<12x32xf32, #tpu.memory_space<vmem>>, vector<1x32xf32>
      %747 = vector.shape_cast %746 : vector<1x32xf32> to vector<32xf32>
      %748 = vector.shape_cast %747 : vector<32xf32> to vector<1x32xf32>
      %c10_42 = arith.constant 10 : index
      %c0_43 = arith.constant 0 : index
      %749 = vector.load %arg2[%c10_42, %c0_43] : memref<12x32xf32, #tpu.memory_space<vmem>>, vector<1x32xf32>
      %750 = vector.shape_cast %749 : vector<1x32xf32> to vector<32xf32>
      %751 = vector.shape_cast %750 : vector<32xf32> to vector<1x32xf32>
      %752 = arith.addf %626, %630 : vector<8x1xf32>
      %753 = vector.broadcast %752 : vector<8x1xf32> to vector<8x32xf32>
      %754 = vector.broadcast %748 : vector<1x32xf32> to vector<8x32xf32>
      %755 = arith.mulf %753, %754 : vector<8x32xf32>
      %756 = arith.addf %728, %755 : vector<8x32xf32>
      %757 = vector.broadcast %626 : vector<8x1xf32> to vector<8x32xf32>
      %758 = vector.broadcast %751 : vector<1x32xf32> to vector<8x32xf32>
      %759 = arith.mulf %757, %758 : vector<8x32xf32>
      %760 = arith.addf %738, %759 : vector<8x32xf32>
      %761 = vector.broadcast %630 : vector<8x1xf32> to vector<8x32xf32>
      %762 = vector.broadcast %751 : vector<1x32xf32> to vector<8x32xf32>
      %763 = arith.mulf %761, %762 : vector<8x32xf32>
      %764 = arith.addf %745, %763 : vector<8x32xf32>
      %765 = arith.mulf %760, %764 : vector<8x32xf32>
      %766 = vector.broadcast %0 : f32 to vector<8x32xf32>
      %767 = arith.maximumf %765, %766 : vector<8x32xf32>
      %768 = math.rsqrt %767 : vector<8x32xf32>
      %769 = arith.mulf %756, %768 : vector<8x32xf32>
      %770 = arith.index_cast %5 : i32 to index
      %c256_44 = arith.constant 256 : index
      %771 = vector.load %arg4[%770, %c256_44] : memref<40x288xf32, #tpu.memory_space<vmem>>, vector<8x32xf32>
      tpu.vector_store %arg4[%770, %c256_44], %769 {strides = array<i32>} : memref<40x288xf32, #tpu.memory_space<vmem>>, vector<8x32xf32>,
    }
    %c5_i32_1 = arith.constant 5 : i32
    return
  }
  func.func @transform_0(%arg0: i32) -> (i32, i32) {
    %c0_i32 = arith.constant 0 : i32
    %c0_i32_0 = arith.constant 0 : i32
    return %arg0, %c0_i32 : i32, i32
  }
  func.func @transform_1(%arg0: i32) -> (i32, i32) {
    %c0_i32 = arith.constant 0 : i32
    %c0_i32_0 = arith.constant 0 : i32
    %c0_i32_1 = arith.constant 0 : i32
    return %c0_i32, %c0_i32_0 : i32, i32
  }
  func.func @transform_2(%arg0: i32) -> i32 {
    %c0_i32 = arith.constant 0 : i32
    %c0_i32_0 = arith.constant 0 : i32
    return %c0_i32 : i32
  }
  func.func @transform_3(%arg0: i32) -> (i32, i32) {
    %c0_i32 = arith.constant 0 : i32
    %c0_i32_0 = arith.constant 0 : i32
    return %arg0, %c0_i32 : i32, i32
  }
}

</mosaic_0001>

<llo_original>
// kernel: tpu_custom_call.1
$region0: #{tpu_custom_call.1}
  #allocation0 [shape = 'u32[]', space=smem, size = 0x4, offset = 0x4, fixed_abs, tag = 'smem constant byte address 0x4 - core index']
  #allocation1 [shape = 'u32[72,128]{1,0:T(1,128)}', space=vmem, size = 0x9000, scoped, tag = 'internal scratch']
  %s0 = inlined_call_operand.hbm [shape: f32[80,1024], index: 0, kind: input, shape index: {}]
  %s1 = inlined_call_operand.hbm [shape: f32[12,32], index: 1, kind: input, shape index: {}]
  %s2 = inlined_call_operand.hbm [shape: f32[160], index: 2, kind: input, shape index: {}]
  %s3 = inlined_call_operand.hbm [shape: f32[80,288], index: 3, kind: output, shape index: {}]
  %s4 = sld [smem:[#allocation0]]
  $region64: #{tpu_custom_call.1} parent=0
    _
  %s6 = ssub.s32 1, %s4
  %s7 = scalar_select 0, %s6, %s4
  $region1: #{tpu_custom_call.1} parent=0
    #allocation2 [shape = 'u8[327680]{0}', space=vmem, size = 0x50000, scoped, tag = 'input window, operand 0']
    #allocation3 [shape = 's32[2]{0}', space=sflag, size = 0x8, scoped, tag = 'scoped memory for tpu_custom_call.1']
    #allocation4 [shape = 's32[2]{0}', space=sflag, size = 0x8, scoped, tag = 'scoped memory for tpu_custom_call.1']
    #allocation5 [shape = 's32[2]{0}', space=sflag, size = 0x8, scoped, tag = 'scoped memory for tpu_custom_call.1']
    #allocation6 [shape = 'u8[8192]{0}', space=vmem, size = 0x2000, scoped, tag = 'input window, operand 1, single buffered']
    #allocation7 [shape = 's32[1]{0}', space=sflag, size = 0x4, scoped, tag = 'scoped memory for tpu_custom_call.1']
    #allocation8 [shape = 'u8[1024]{0}', space=smem, size = 0x400, scoped, tag = 'input window, operand 2, single buffered']
    #allocation9 [shape = 'u8[122880]{0}', space=vmem, size = 0x1e000, scoped, tag = 'output window, operand 0']
    %8 = vsyncpa [#allocation3], 0
    %s9 = scalar_lea.sflag [#allocation3], 1
    %10 = vsyncpa %s9, 0
    %11 = vsyncpa [#allocation7], 0
    %12 = vsyncpa [#allocation5], 0
    %13 = vsyncpa [#allocation4], 0
    %s14 = scalar_lea.sflag [#allocation4], 1
    %15 = vsyncpa %s14, 0
    loop: start=0, step=1, limit=4
    $region2: #{tpu_custom_call.1} parent=1 // loop_pre_header
      _
    $region3: #{tpu_custom_call.1} parent=1 // loop_header
      %s17 = sphi 0, %s21
      %p18 = scmp.ge.s32.totalorder %s17, 4
      %s27 = sphi 0, %s29
      %s30 = sphi 0, %s27
      %s31 = sphi 0, %s30
      %s47 = sphi 0, %s31
      %s51 = sphi 0, %s51
      %s53 = sphi 0, %s51
      %s54 = sphi 0, %s53
      %s68 = sphi 0, %s54
      %s72 = sphi 0, %s72
      %s74 = sphi 0, %s72
      %s75 = sphi 0, %s74
      %s89 = sphi 0, %s75
      %s95 = sphi 0, %s97
      %s98 = sphi 0, %s95
      %s99 = sphi 0, %s98
      %s115 = sphi 0, %s99
    $region4: #{tpu_custom_call.1} parent=1 // loop_header_branch
      %20 = sbr.rel (%p18) target = $region8
    $region5: #{tpu_custom_call.1} parent=1 // loop_body
      %s22 = ssub.s32 %s17, 1
      %s23 = ssub.s32 %s17, 2
      %s24 = sadd.s32 %s17, 1
      %s25 = ssub.s32 %s17, %s24
      %p26 = scmp.eq.s32.totalorder %s25, 0
      %s28 = sadd.s32 %s27, 1
      %s29 = scalar_select %p26, %s27, %s28
      %p32 = pneg %p26
      %p33 = scmp.eq.s32.totalorder %s17, 1
      %p34 = por %p32, %p33
      %p35 = scmp.ne.s32.totalorder %s27, %s30
      %p36 = scmp.eq.s32.totalorder %s17, 0
      %p37 = por %p35, %p36
      %p38 = scmp.ne.s32.totalorder %s27, %s30
      %p39 = scmp.eq.s32.totalorder %s22, 1
      %p40 = por %p38, %p39
      %p41 = scmp.ne.s32.totalorder %s30, %s31
      %p42 = scmp.eq.s32.totalorder %s22, 0
      %p43 = por %p41, %p42
      %p44 = scmp.ne.s32.totalorder %s30, %s31
      %p45 = scmp.eq.s32.totalorder %s23, 1
      %p46 = por %p44, %p45
      %p48 = scmp.ne.s32.totalorder %s31, %s47
      %p49 = scmp.eq.s32.totalorder %s23, 0
      %p50 = por %p48, %p49
      %s52 = sadd.s32 %s51, 1
      %p55 = scmp.eq.s32.totalorder %s17, 1
      %p56 = scmp.ne.s32.totalorder %s51, %s53
      %p57 = scmp.eq.s32.totalorder %s17, 0
      %p58 = por %p56, %p57
      %p59 = scmp.ne.s32.totalorder %s51, %s53
      %p60 = scmp.eq.s32.totalorder %s22, 1
      %p61 = por %p59, %p60
      %p62 = scmp.ne.s32.totalorder %s53, %s54
      %p63 = scmp.eq.s32.totalorder %s22, 0
      %p64 = por %p62, %p63
      %p65 = scmp.ne.s32.totalorder %s53, %s54
      %p66 = scmp.eq.s32.totalorder %s23, 1
      %p67 = por %p65, %p66
      %p69 = scmp.ne.s32.totalorder %s54, %s68
      %p70 = scmp.eq.s32.totalorder %s23, 0
      %p71 = por %p69, %p70
      %s73 = sadd.s32 %s72, 1
      %p76 = scmp.eq.s32.totalorder %s17, 1
      %p77 = scmp.ne.s32.totalorder %s72, %s74
      %p78 = scmp.eq.s32.totalorder %s17, 0
      %p79 = por %p77, %p78
      %p80 = scmp.ne.s32.totalorder %s72, %s74
      %p81 = scmp.eq.s32.totalorder %s22, 1
      %p82 = por %p80, %p81
      %p83 = scmp.ne.s32.totalorder %s74, %s75
      %p84 = scmp.eq.s32.totalorder %s22, 0
      %p85 = por %p83, %p84
      %p86 = scmp.ne.s32.totalorder %s74, %s75
      %p87 = scmp.eq.s32.totalorder %s23, 1
      %p88 = por %p86, %p87
      %p90 = scmp.ne.s32.totalorder %s75, %s89
      %p91 = scmp.eq.s32.totalorder %s23, 0
      %p92 = por %p90, %p91
      %s93 = ssub.s32 %s17, %s24
      %p94 = scmp.eq.s32.totalorder %s93, 0
      %s96 = sadd.s32 %s95, 1
      %s97 = scalar_select %p94, %s95, %s96
      %p100 = pneg %p94
      %p101 = scmp.eq.s32.totalorder %s17, 1
      %p102 = por %p100, %p101
      %p103 = scmp.ne.s32.totalorder %s95, %s98
      %p104 = scmp.eq.s32.totalorder %s17, 0
      %p105 = por %p103, %p104
      %p106 = scmp.ne.s32.totalorder %s95, %s98
      %p107 = scmp.eq.s32.totalorder %s22, 1
      %p108 = por %p106, %p107
      %p109 = scmp.ne.s32.totalorder %s98, %s99
      %p110 = scmp.eq.s32.totalorder %s22, 0
      %p111 = por %p109, %p110
      %p112 = scmp.ne.s32.totalorder %s98, %s99
      %p113 = scmp.eq.s32.totalorder %s23, 1
      %p114 = por %p112, %p113
      %p116 = scmp.ne.s32.totalorder %s99, %s115
      %p117 = scmp.eq.s32.totalorder %s23, 0
      %p118 = por %p116, %p117
      %p119 = scmp.le.s32.totalorder 1, %s17
      %p120 = scmp.lt.s32.totalorder %s17, 3
      %p121 = pnand %p119, %p120
      %p122 = pneg %p121
      // Predicated region
      $region9: #{tpu_custom_call.1} parent=5 // pred_check
        _
      $region10: #{tpu_custom_call.1} parent=5 // pred_check_branch
        %124 = sbr.rel (%p121) target = $region12
      $region11: #{tpu_custom_call.1} parent=5 // pred_region
        %s125 = ssub.s32 %s17, 1
        // Predicated region
        $region13: #{tpu_custom_call.1} parent=11 // pred_check
          %p126 = pneg %p64
        $region14: #{tpu_custom_call.1} parent=11 // pred_check_branch
          %128 = sbr.rel (%p126) target = $region16
        $region15: #{tpu_custom_call.1} parent=11 // pred_region
          %130 = vsyncadd [#allocation7], 0
          %s131 = sshll.u32 %s1, 4
          %s132 = int_to_ptr.hbm [resolvable:$true] %s131
          %s133 = sshll.u32 [#allocation6], 4
          %s134 = int_to_ptr.vmem [resolvable:$true] %s133
          %139 = dma.hbm_to_vmem [thread:$0]  %s132, 256, %s134, [#allocation7], 128, 128, 8
        $region16: #{tpu_custom_call.1} parent=11 // pred_fallthru
          _
        // Predicated region
        $region17: #{tpu_custom_call.1} parent=11 // pred_check
          %p140 = pneg %p85
        $region18: #{tpu_custom_call.1} parent=11 // pred_check_branch
          %142 = sbr.rel (%p140) target = $region20
        $region19: #{tpu_custom_call.1} parent=11 // pred_region
          %144 = vsyncadd [#allocation5], 0
          %s146 = sshll.u32 %s2, 4
          %s147 = int_to_ptr.hbm [resolvable:$true] %s146
          %149 = dma.hbm_to_smem %s147, 32, [#allocation8], [#allocation5]
        $region20: #{tpu_custom_call.1} parent=11 // pred_fallthru
          _
      $region12: #{tpu_custom_call.1} parent=5 // pred_fallthru
        _
      %p150 = scmp.lt.s32.totalorder %s17, 2
      // Predicated region
      $region21: #{tpu_custom_call.1} parent=5 // pred_check
        %p151 = pneg %p150
      $region22: #{tpu_custom_call.1} parent=5 // pred_check_branch
        %153 = sbr.rel (%p151) target = $region24
      $region23: #{tpu_custom_call.1} parent=5 // pred_region
        // Predicated region
        $region25: #{tpu_custom_call.1} parent=23 // pred_check
          %p154 = pneg %p37
        $region26: #{tpu_custom_call.1} parent=23 // pred_check_branch
          %156 = sbr.rel (%p154) target = $region28
        $region27: #{tpu_custom_call.1} parent=23 // pred_region
          %s157 = sand.u32 %s27, 1
          %s158 = scalar_lea.sflag [#allocation3], %s157
          %s159 = sand.u32 %s27, 1
          %s160 = smul.addr %s159, 320
          %s161 = scalar_lea.vmem [#allocation2], %s160
          %s162 = smul.u32 5, %s17
          %164 = vsyncadd %s158, 0
          %s165 = smul.addr %s162, 8
          %s166 = smul.addr %s165, 8
          %s167 = scalar_lea.hbm %s0, %s166
          %s168 = sshll.u32 %s167, 4
          %s169 = int_to_ptr.hbm [resolvable:$true] %s168
          %s170 = sshll.u32 %s161, 4
          %s171 = int_to_ptr.vmem [resolvable:$true] %s170
          %176 = dma.hbm_to_vmem [thread:$0]  %s169, 5120, %s171, %s158, 1024, 1024, 64
        $region28: #{tpu_custom_call.1} parent=23 // pred_fallthru
          _
      $region24: #{tpu_custom_call.1} parent=5 // pred_fallthru
        _
      %p177 = scmp.le.s32.totalorder 1, %s17
      %p178 = scmp.lt.s32.totalorder %s17, 3
      %p179 = pnand %p177, %p178
      %p180 = pneg %p179
      // Predicated region
      $region29: #{tpu_custom_call.1} parent=5 // pred_check
        _
      $region30: #{tpu_custom_call.1} parent=5 // pred_check_branch
        %182 = sbr.rel (%p179) target = $region32
      $region31: #{tpu_custom_call.1} parent=5 // pred_region
        %s183 = ssub.s32 %s17, 1
        %s184 = sand.u32 %s30, 1
        %s185 = scalar_lea.sflag [#allocation3], %s184
        %s186 = sand.u32 %s30, 1
        %s187 = smul.addr %s186, 320
        %s188 = scalar_lea.vmem [#allocation2], %s187
        // Predicated region
        $region33: #{tpu_custom_call.1} parent=31 // pred_check
          %p189 = pneg %p43
        $region34: #{tpu_custom_call.1} parent=31 // pred_check_branch
          %191 = sbr.rel (%p189) target = $region36
        $region35: #{tpu_custom_call.1} parent=31 // pred_region
          %193 = dma.done %s185, 5120
        $region36: #{tpu_custom_call.1} parent=31 // pred_fallthru
          _
        // Predicated region
        $region37: #{tpu_custom_call.1} parent=31 // pred_check
          %p194 = pneg %p64
        $region38: #{tpu_custom_call.1} parent=31 // pred_check_branch
          %196 = sbr.rel (%p194) target = $region40
        $region39: #{tpu_custom_call.1} parent=31 // pred_region
          %198 = dma.done [#allocation7], 256
        $region40: #{tpu_custom_call.1} parent=31 // pred_fallthru
          _
        // Predicated region
        $region41: #{tpu_custom_call.1} parent=31 // pred_check
          %p199 = pneg %p85
        $region42: #{tpu_custom_call.1} parent=31 // pred_check_branch
          %201 = sbr.rel (%p199) target = $region44
        $region43: #{tpu_custom_call.1} parent=31 // pred_region
          %203 = dma.done [#allocation5], 32
        $region44: #{tpu_custom_call.1} parent=31 // pred_fallthru
          _
        %204 = sfence
        %s205 = sand.u32 %s30, 1
        %s206 = scalar_lea.sflag [#allocation3], %s205
        %s207 = sand.u32 %s30, 1
        %s208 = smul.addr %s207, 320
        %s209 = scalar_lea.vmem [#allocation2], %s208
        %p210 = pneg %p43
        %p211 = pneg %p40
        %p212 = pneg %p64
        %p213 = pneg %p61
        %p214 = pneg %p85
        %p215 = pneg %p82
        %p216 = pneg %p111
        %p217 = pneg %p108
        %s218 = sand.u32 %s98, 1
        %s219 = scalar_lea.sflag [#allocation4], %s218
        %s220 = sand.u32 %s98, 1
        %s221 = smul.addr %s220, 120
        %s222 = scalar_lea.vmem [#allocation9], %s221
        %s223 = smul.u32 5, %s22
        %s224 = smul.u32 5, %s22
        loop: start=0, step=1, limit=5
        $region45: #{tpu_custom_call.1} parent=31 // loop_pre_header
          _
        $region46: #{tpu_custom_call.1} parent=31 // loop_header
          %s226 = sphi 0, %s230
          %p227 = scmp.ge.s32.totalorder %s226, 5
        $region47: #{tpu_custom_call.1} parent=31 // loop_header_branch
          %229 = sbr.rel (%p227) target = $region51
        $region48: #{tpu_custom_call.1} parent=31 // loop_body
          %s231 = smul.u32 %s226, 8
          %s232 = sshra.s32 %s231, 3
          %s233 = sand.u32 %s231, 7
          %s234 = smul.u32 %s232, 8
          %s235 = smul.addr %s234, 8
          %s236 = scalar_lea.vmem %s188, %s235 [#allocation2]
          %v237 = vld [vmem:[%s236] sm:$0xff]
          %v238 = vld [vmem:[%s236 + $0x8] sm:$0xff]
          %v239 = vld [vmem:[%s236 + $0x10] sm:$0xff]
          %v240 = vld [vmem:[%s236 + $0x18] sm:$0xff]
          %v241 = vld [vmem:[%s236 + $0x20] sm:$0xff]
          %v242 = vld [vmem:[%s236 + $0x28] sm:$0xff]
          %v243 = vld [vmem:[%s236 + $0x30] sm:$0xff]
          %v244 = vld [vmem:[%s236 + $0x38] sm:$0xff]
          %s245 = sld [smem:[#allocation8]]
          %v246 = vstv %s245
          %v247 = vmul.f32 %v237, %v246
          %v248 = vmul.f32 %v238, %v246
          %s249 = sld [smem:[#allocation8 + $0x1]]
          %v250 = vstv %s249
          %v251 = vmul.f32 %v239, %v250
          %v252 = vmul.f32 %v240, %v250
          %v253 = vadd.f32 %v247, %v251
          %v254 = vadd.f32 %v248, %v252
          %s255 = sld [smem:[#allocation8 + $0x2]]
          %v256 = vstv %s255
          %v257 = vmul.f32 %v241, %v256
          %v258 = vmul.f32 %v242, %v256
          %v259 = vadd.f32 %v253, %v257
          %v260 = vadd.f32 %v254, %v258
          %s261 = sld [smem:[#allocation8 + $0x3]]
          %v262 = vstv %s261
          %v263 = vmul.f32 %v243, %v262
          %v264 = vmul.f32 %v244, %v262
          %v265 = vadd.f32 %v259, %v263
          %v266 = vadd.f32 %v260, %v264
          %s267 = sld [smem:[#allocation8 + $0x4]]
          %v268 = vstv %s267
          %v269 = vadd.f32 %v265, %v268
          %v270 = vadd.f32 %v266, %v268
          %s271 = sld [smem:[#allocation8 + $0x5]]
          %v272 = vstv %s271
          %v273 = vmul.f32 %v237, %v272
          %v274 = vmul.f32 %v238, %v272
          %s275 = sld [smem:[#allocation8 + $0x6]]
          %v276 = vstv %s275
          %v277 = vmul.f32 %v239, %v276
          %v278 = vmul.f32 %v240, %v276
          %v279 = vadd.f32 %v273, %v277
          %v280 = vadd.f32 %v274, %v278
          %s281 = sld [smem:[#allocation8 + $0x7]]
          %v282 = vstv %s281
          %v283 = vmul.f32 %v241, %v282
          %v284 = vmul.f32 %v242, %v282
          %v285 = vadd.f32 %v279, %v283
          %v286 = vadd.f32 %v280, %v284
          %s287 = sld [smem:[#allocation8 + $0x8]]
          %v288 = vstv %s287
          %v289 = vmul.f32 %v243, %v288
          %v290 = vmul.f32 %v244, %v288
          %v291 = vadd.f32 %v285, %v289
          %v292 = vadd.f32 %v286, %v290
          %s293 = sld [smem:[#allocation8 + $0x9]]
          %v294 = vstv %s293
          %v295 = vadd.f32 %v291, %v294
          %v296 = vadd.f32 %v292, %v294
          %v297 = vmax.f32 %v269, %v295
          %v298 = vmax.f32 %v270, %v296
          %s299 = sld [smem:[#allocation8 + $0xa]]
          %v300 = vstv %s299
          %v301 = vmul.f32 %v237, %v300
          %v302 = vmul.f32 %v238, %v300
          %s303 = sld [smem:[#allocation8 + $0xb]]
          %v304 = vstv %s303
          %v305 = vmul.f32 %v239, %v304
          %v306 = vmul.f32 %v240, %v304
          %v307 = vadd.f32 %v301, %v305
          %v308 = vadd.f32 %v302, %v306
          %s309 = sld [smem:[#allocation8 + $0xc]]
          %v310 = vstv %s309
          %v311 = vmul.f32 %v241, %v310
          %v312 = vmul.f32 %v242, %v310
          %v313 = vadd.f32 %v307, %v311
          %v314 = vadd.f32 %v308, %v312
          %s315 = sld [smem:[#allocation8 + $0xd]]
          %v316 = vstv %s315
          %v317 = vmul.f32 %v243, %v316
          %v318 = vmul.f32 %v244, %v316
          %v319 = vadd.f32 %v313, %v317
          %v320 = vadd.f32 %v314, %v318
          %s321 = sld [smem:[#allocation8 + $0xe]]
          %v322 = vstv %s321
          %v323 = vadd.f32 %v319, %v322
          %v324 = vadd.f32 %v320, %v322
          %v325 = vmax.f32 %v297, %v323
          %v326 = vmax.f32 %v298, %v324
          %s327 = sld [smem:[#allocation8 + $0xf]]
          %v328 = vstv %s327
          %v329 = vmul.f32 %v237, %v328
          %v330 = vmul.f32 %v238, %v328
          %s331 = sld [smem:[#allocation8 + $0x10]]
          %v332 = vstv %s331
          %v333 = vmul.f32 %v239, %v332
          %v334 = vmul.f32 %v240, %v332
          %v335 = vadd.f32 %v329, %v333
          %v336 = vadd.f32 %v330, %v334
          %s337 = sld [smem:[#allocation8 + $0x11]]
          %v338 = vstv %s337
          %v339 = vmul.f32 %v241, %v338
          %v340 = vmul.f32 %v242, %v338
          %v341 = vadd.f32 %v335, %v339
          %v342 = vadd.f32 %v336, %v340
          %s343 = sld [smem:[#allocation8 + $0x12]]
          %v344 = vstv %s343
          %v345 = vmul.f32 %v243, %v344
          %v346 = vmul.f32 %v244, %v344
          %v347 = vadd.f32 %v341, %v345
          %v348 = vadd.f32 %v342, %v346
          %s349 = sld [smem:[#allocation8 + $0x13]]
          %v350 = vstv %s349
          %v351 = vadd.f32 %v347, %v350
          %v352 = vadd.f32 %v348, %v350
          %v353 = vmax.f32 %v325, %v351
          %v354 = vmax.f32 %v326, %v352
          %s355 = sld [smem:[#allocation8 + $0x14]]
          %v356 = vstv %s355
          %v357 = vmul.f32 %v237, %v356
          %v358 = vmul.f32 %v238, %v356
          %s359 = sld [smem:[#allocation8 + $0x15]]
          %v360 = vstv %s359
          %v361 = vmul.f32 %v239, %v360
          %v362 = vmul.f32 %v240, %v360
          %v363 = vadd.f32 %v357, %v361
          %v364 = vadd.f32 %v358, %v362
          %s365 = sld [smem:[#allocation8 + $0x16]]
          %v366 = vstv %s365
          %v367 = vmul.f32 %v241, %v366
          %v368 = vmul.f32 %v242, %v366
          %v369 = vadd.f32 %v363, %v367
          %v370 = vadd.f32 %v364, %v368
          %s371 = sld [smem:[#allocation8 + $0x17]]
          %v372 = vstv %s371
          %v373 = vmul.f32 %v243, %v372
          %v374 = vmul.f32 %v244, %v372
          %v375 = vadd.f32 %v369, %v373
          %v376 = vadd.f32 %v370, %v374
          %s377 = sld [smem:[#allocation8 + $0x18]]
          %v378 = vstv %s377
          %v379 = vadd.f32 %v375, %v378
          %v380 = vadd.f32 %v376, %v378
          %v381 = vmax.f32 %v353, %v379
          %v382 = vmax.f32 %v354, %v380
          %s383 = sld [smem:[#allocation8 + $0x19]]
          %v384 = vstv %s383
          %v385 = vmul.f32 %v237, %v384
          %v386 = vmul.f32 %v238, %v384
          %s387 = sld [smem:[#allocation8 + $0x1a]]
          %v388 = vstv %s387
          %v389 = vmul.f32 %v239, %v388
          %v390 = vmul.f32 %v240, %v388
          %v391 = vadd.f32 %v385, %v389
          %v392 = vadd.f32 %v386, %v390
          %s393 = sld [smem:[#allocation8 + $0x1b]]
          %v394 = vstv %s393
          %v395 = vmul.f32 %v241, %v394
          %v396 = vmul.f32 %v242, %v394
          %v397 = vadd.f32 %v391, %v395
          %v398 = vadd.f32 %v392, %v396
          %s399 = sld [smem:[#allocation8 + $0x1c]]
          %v400 = vstv %s399
          %v401 = vmul.f32 %v243, %v400
          %v402 = vmul.f32 %v244, %v400
          %v403 = vadd.f32 %v397, %v401
          %v404 = vadd.f32 %v398, %v402
          %s405 = sld [smem:[#allocation8 + $0x1d]]
          %v406 = vstv %s405
          %v407 = vadd.f32 %v403, %v406
          %v408 = vadd.f32 %v404, %v406
          %v409 = vmax.f32 %v381, %v407
          %v410 = vmax.f32 %v382, %v408
          %s411 = sld [smem:[#allocation8 + $0x1e]]
          %v412 = vstv %s411
          %v413 = vmul.f32 %v237, %v412
          %v414 = vmul.f32 %v238, %v412
          %s415 = sld [smem:[#allocation8 + $0x1f]]
          %v416 = vstv %s415
          %v417 = vmul.f32 %v239, %v416
          %v418 = vmul.f32 %v240, %v416
          %v419 = vadd.f32 %v413, %v417
          %v420 = vadd.f32 %v414, %v418
          %s421 = sld [smem:[#allocation8 + $0x20]]
          %v422 = vstv %s421
          %v423 = vmul.f32 %v241, %v422
          %v424 = vmul.f32 %v242, %v422
          %v425 = vadd.f32 %v419, %v423
          %v426 = vadd.f32 %v420, %v424
          %s427 = sld [smem:[#allocation8 + $0x21]]
          %v428 = vstv %s427
          %v429 = vmul.f32 %v243, %v428
          %v430 = vmul.f32 %v244, %v428
          %v431 = vadd.f32 %v425, %v429
          %v432 = vadd.f32 %v426, %v430
          %s433 = sld [smem:[#allocation8 + $0x22]]
          %v434 = vstv %s433
          %v435 = vadd.f32 %v431, %v434
          %v436 = vadd.f32 %v432, %v434
          %v437 = vmax.f32 %v409, %v435
          %v438 = vmax.f32 %v410, %v436
          %s439 = sld [smem:[#allocation8 + $0x23]]
          %v440 = vstv %s439
          %v441 = vmul.f32 %v237, %v440
          %v442 = vmul.f32 %v238, %v440
          %s443 = sld [smem:[#allocation8 + $0x24]]
          %v444 = vstv %s443
          %v445 = vmul.f32 %v239, %v444
          %v446 = vmul.f32 %v240, %v444
          %v447 = vadd.f32 %v441, %v445
          %v448 = vadd.f32 %v442, %v446
          %s449 = sld [smem:[#allocation8 + $0x25]]
          %v450 = vstv %s449
          %v451 = vmul.f32 %v241, %v450
          %v452 = vmul.f32 %v242, %v450
          %v453 = vadd.f32 %v447, %v451
          %v454 = vadd.f32 %v448, %v452
          %s455 = sld [smem:[#allocation8 + $0x26]]
          %v456 = vstv %s455
          %v457 = vmul.f32 %v243, %v456
          %v458 = vmul.f32 %v244, %v456
          %v459 = vadd.f32 %v453, %v457
          %v460 = vadd.f32 %v454, %v458
          %s461 = sld [smem:[#allocation8 + $0x27]]
          %v462 = vstv %s461
          %v463 = vadd.f32 %v459, %v462
          %v464 = vadd.f32 %v460, %v462
          %v465 = vmax.f32 %v437, %v463
          %v466 = vmax.f32 %v438, %v464
          %s467 = sld [smem:[#allocation8 + $0x28]]
          %v468 = vstv %s467
          %v469 = vmul.f32 %v237, %v468
          %v470 = vmul.f32 %v238, %v468
          %s471 = sld [smem:[#allocation8 + $0x29]]
          %v472 = vstv %s471
          %v473 = vmul.f32 %v239, %v472
          %v474 = vmul.f32 %v240, %v472
          %v475 = vadd.f32 %v469, %v473
          %v476 = vadd.f32 %v470, %v474
          %s477 = sld [smem:[#allocation8 + $0x2a]]
          %v478 = vstv %s477
          %v479 = vmul.f32 %v241, %v478
          %v480 = vmul.f32 %v242, %v478
          %v481 = vadd.f32 %v475, %v479
          %v482 = vadd.f32 %v476, %v480
          %s483 = sld [smem:[#allocation8 + $0x2b]]
          %v484 = vstv %s483
          %v485 = vmul.f32 %v243, %v484
          %v486 = vmul.f32 %v244, %v484
          %v487 = vadd.f32 %v481, %v485
          %v488 = vadd.f32 %v482, %v486
          %s489 = sld [smem:[#allocation8 + $0x2c]]
          %v490 = vstv %s489
          %v491 = vadd.f32 %v487, %v490
          %v492 = vadd.f32 %v488, %v490
          %v493 = vmax.f32 %v465, %v491
          %v494 = vmax.f32 %v466, %v492
          %s495 = sld [smem:[#allocation8 + $0x2d]]
          %v496 = vstv %s495
          %v497 = vmul.f32 %v237, %v496
          %v498 = vmul.f32 %v238, %v496
          %s499 = sld [smem:[#allocation8 + $0x2e]]
          %v500 = vstv %s499
          %v501 = vmul.f32 %v239, %v500
          %v502 = vmul.f32 %v240, %v500
          %v503 = vadd.f32 %v497, %v501
          %v504 = vadd.f32 %v498, %v502
          %s505 = sld [smem:[#allocation8 + $0x2f]]
          %v506 = vstv %s505
          %v507 = vmul.f32 %v241, %v506
          %v508 = vmul.f32 %v242, %v506
          %v509 = vadd.f32 %v503, %v507
          %v510 = vadd.f32 %v504, %v508
          %s511 = sld [smem:[#allocation8 + $0x30]]
          %v512 = vstv %s511
          %v513 = vmul.f32 %v243, %v512
          %v514 = vmul.f32 %v244, %v512
          %v515 = vadd.f32 %v509, %v513
          %v516 = vadd.f32 %v510, %v514
          %s517 = sld [smem:[#allocation8 + $0x31]]
          %v518 = vstv %s517
          %v519 = vadd.f32 %v515, %v518
          %v520 = vadd.f32 %v516, %v518
          %v521 = vmax.f32 %v493, %v519
          %v522 = vmax.f32 %v494, %v520
          %s523 = sld [smem:[#allocation8 + $0x32]]
          %v524 = vstv %s523
          %v525 = vmul.f32 %v237, %v524
          %v526 = vmul.f32 %v238, %v524
          %s527 = sld [smem:[#allocation8 + $0x33]]
          %v528 = vstv %s527
          %v529 = vmul.f32 %v239, %v528
          %v530 = vmul.f32 %v240, %v528
          %v531 = vadd.f32 %v525, %v529
          %v532 = vadd.f32 %v526, %v530
          %s533 = sld [smem:[#allocation8 + $0x34]]
          %v534 = vstv %s533
          %v535 = vmul.f32 %v241, %v534
          %v536 = vmul.f32 %v242, %v534
          %v537 = vadd.f32 %v531, %v535
          %v538 = vadd.f32 %v532, %v536
          %s539 = sld [smem:[#allocation8 + $0x35]]
          %v540 = vstv %s539
          %v541 = vmul.f32 %v243, %v540
          %v542 = vmul.f32 %v244, %v540
          %v543 = vadd.f32 %v537, %v541
          %v544 = vadd.f32 %v538, %v542
          %s545 = sld [smem:[#allocation8 + $0x36]]
          %v546 = vstv %s545
          %v547 = vadd.f32 %v543, %v546
          %v548 = vadd.f32 %v544, %v546
          %v549 = vmax.f32 %v521, %v547
          %v550 = vmax.f32 %v522, %v548
          %s551 = sld [smem:[#allocation8 + $0x37]]
          %v552 = vstv %s551
          %v553 = vmul.f32 %v237, %v552
          %v554 = vmul.f32 %v238, %v552
          %s555 = sld [smem:[#allocation8 + $0x38]]
          %v556 = vstv %s555
          %v557 = vmul.f32 %v239, %v556
          %v558 = vmul.f32 %v240, %v556
          %v559 = vadd.f32 %v553, %v557
          %v560 = vadd.f32 %v554, %v558
          %s561 = sld [smem:[#allocation8 + $0x39]]
          %v562 = vstv %s561
          %v563 = vmul.f32 %v241, %v562
          %v564 = vmul.f32 %v242, %v562
          %v565 = vadd.f32 %v559, %v563
          %v566 = vadd.f32 %v560, %v564
          %s567 = sld [smem:[#allocation8 + $0x3a]]
          %v568 = vstv %s567
          %v569 = vmul.f32 %v243, %v568
          %v570 = vmul.f32 %v244, %v568
          %v571 = vadd.f32 %v565, %v569
          %v572 = vadd.f32 %v566, %v570
          %s573 = sld [smem:[#allocation8 + $0x3b]]
          %v574 = vstv %s573
          %v575 = vadd.f32 %v571, %v574
          %v576 = vadd.f32 %v572, %v574
          %v577 = vmax.f32 %v549, %v575
          %v578 = vmax.f32 %v550, %v576
          %s579 = sld [smem:[#allocation8 + $0x3c]]
          %v580 = vstv %s579
          %v581 = vmul.f32 %v237, %v580
          %v582 = vmul.f32 %v238, %v580
          %s583 = sld [smem:[#allocation8 + $0x3d]]
          %v584 = vstv %s583
          %v585 = vmul.f32 %v239, %v584
          %v586 = vmul.f32 %v240, %v584
          %v587 = vadd.f32 %v581, %v585
          %v588 = vadd.f32 %v582, %v586
          %s589 = sld [smem:[#allocation8 + $0x3e]]
          %v590 = vstv %s589
          %v591 = vmul.f32 %v241, %v590
          %v592 = vmul.f32 %v242, %v590
          %v593 = vadd.f32 %v587, %v591
          %v594 = vadd.f32 %v588, %v592
          %s595 = sld [smem:[#allocation8 + $0x3f]]
          %v596 = vstv %s595
          %v597 = vmul.f32 %v243, %v596
          %v598 = vmul.f32 %v244, %v596
          %v599 = vadd.f32 %v593, %v597
          %v600 = vadd.f32 %v594, %v598
          %s601 = sld [smem:[#allocation8 + $0x40]]
          %v602 = vstv %s601
          %v603 = vadd.f32 %v599, %v602
          %v604 = vadd.f32 %v600, %v602
          %v605 = vmax.f32 %v577, %v603
          %v606 = vmax.f32 %v578, %v604
          %s607 = sld [smem:[#allocation8 + $0x41]]
          %v608 = vstv %s607
          %v609 = vmul.f32 %v237, %v608
          %v610 = vmul.f32 %v238, %v608
          %s611 = sld [smem:[#allocation8 + $0x42]]
          %v612 = vstv %s611
          %v613 = vmul.f32 %v239, %v612
          %v614 = vmul.f32 %v240, %v612
          %v615 = vadd.f32 %v609, %v613
          %v616 = vadd.f32 %v610, %v614
          %s617 = sld [smem:[#allocation8 + $0x43]]
          %v618 = vstv %s617
          %v619 = vmul.f32 %v241, %v618
          %v620 = vmul.f32 %v242, %v618
          %v621 = vadd.f32 %v615, %v619
          %v622 = vadd.f32 %v616, %v620
          %s623 = sld [smem:[#allocation8 + $0x44]]
          %v624 = vstv %s623
          %v625 = vmul.f32 %v243, %v624
          %v626 = vmul.f32 %v244, %v624
          %v627 = vadd.f32 %v621, %v625
          %v628 = vadd.f32 %v622, %v626
          %s629 = sld [smem:[#allocation8 + $0x45]]
          %v630 = vstv %s629
          %v631 = vadd.f32 %v627, %v630
          %v632 = vadd.f32 %v628, %v630
          %v633 = vmax.f32 %v605, %v631
          %v634 = vmax.f32 %v606, %v632
          %s635 = sld [smem:[#allocation8 + $0x46]]
          %v636 = vstv %s635
          %v637 = vmul.f32 %v237, %v636
          %v638 = vmul.f32 %v238, %v636
          %s639 = sld [smem:[#allocation8 + $0x47]]
          %v640 = vstv %s639
          %v641 = vmul.f32 %v239, %v640
          %v642 = vmul.f32 %v240, %v640
          %v643 = vadd.f32 %v637, %v641
          %v644 = vadd.f32 %v638, %v642
          %s645 = sld [smem:[#allocation8 + $0x48]]
          %v646 = vstv %s645
          %v647 = vmul.f32 %v241, %v646
          %v648 = vmul.f32 %v242, %v646
          %v649 = vadd.f32 %v643, %v647
          %v650 = vadd.f32 %v644, %v648
          %s651 = sld [smem:[#allocation8 + $0x49]]
          %v652 = vstv %s651
          %v653 = vmul.f32 %v243, %v652
          %v654 = vmul.f32 %v244, %v652
          %v655 = vadd.f32 %v649, %v653
          %v656 = vadd.f32 %v650, %v654
          %s657 = sld [smem:[#allocation8 + $0x4a]]
          %v658 = vstv %s657
          %v659 = vadd.f32 %v655, %v658
          %v660 = vadd.f32 %v656, %v658
          %v661 = vmax.f32 %v633, %v659
          %v662 = vmax.f32 %v634, %v660
          %s663 = sld [smem:[#allocation8 + $0x4b]]
          %v664 = vstv %s663
          %v665 = vmul.f32 %v237, %v664
          %v666 = vmul.f32 %v238, %v664
          %s667 = sld [smem:[#allocation8 + $0x4c]]
          %v668 = vstv %s667
          %v669 = vmul.f32 %v239, %v668
          %v670 = vmul.f32 %v240, %v668
          %v671 = vadd.f32 %v665, %v669
          %v672 = vadd.f32 %v666, %v670
          %s673 = sld [smem:[#allocation8 + $0x4d]]
          %v674 = vstv %s673
          %v675 = vmul.f32 %v241, %v674
          %v676 = vmul.f32 %v242, %v674
          %v677 = vadd.f32 %v671, %v675
          %v678 = vadd.f32 %v672, %v676
          %s679 = sld [smem:[#allocation8 + $0x4e]]
          %v680 = vstv %s679
          %v681 = vmul.f32 %v243, %v680
          %v682 = vmul.f32 %v244, %v680
          %v683 = vadd.f32 %v677, %v681
          %v684 = vadd.f32 %v678, %v682
          %s685 = sld [smem:[#allocation8 + $0x4f]]
          %v686 = vstv %s685
          %v687 = vadd.f32 %v683, %v686
          %v688 = vadd.f32 %v684, %v686
          %v689 = vmax.f32 %v661, %v687
          %v690 = vmax.f32 %v662, %v688
          %s691 = sld [smem:[#allocation8 + $0x50]]
          %v692 = vstv %s691
          %v693 = vmul.f32 %v237, %v692
          %v694 = vmul.f32 %v238, %v692
          %s695 = sld [smem:[#allocation8 + $0x51]]
          %v696 = vstv %s695
          %v697 = vmul.f32 %v239, %v696
          %v698 = vmul.f32 %v240, %v696
          %v699 = vadd.f32 %v693, %v697
          %v700 = vadd.f32 %v694, %v698
          %s701 = sld [smem:[#allocation8 + $0x52]]
          %v702 = vstv %s701
          %v703 = vmul.f32 %v241, %v702
          %v704 = vmul.f32 %v242, %v702
          %v705 = vadd.f32 %v699, %v703
          %v706 = vadd.f32 %v700, %v704
          %s707 = sld [smem:[#allocation8 + $0x53]]
          %v708 = vstv %s707
          %v709 = vmul.f32 %v243, %v708
          %v710 = vmul.f32 %v244, %v708
          %v711 = vadd.f32 %v705, %v709
          %v712 = vadd.f32 %v706, %v710
          %s713 = sld [smem:[#allocation8 + $0x54]]
          %v714 = vstv %s713
          %v715 = vadd.f32 %v711, %v714
          %v716 = vadd.f32 %v712, %v714
          %v717 = vmax.f32 %v689, %v715
          %v718 = vmax.f32 %v690, %v716
          %s719 = sld [smem:[#allocation8 + $0x55]]
          %v720 = vstv %s719
          %v721 = vmul.f32 %v237, %v720
          %v722 = vmul.f32 %v238, %v720
          %s723 = sld [smem:[#allocation8 + $0x56]]
          %v724 = vstv %s723
          %v725 = vmul.f32 %v239, %v724
          %v726 = vmul.f32 %v240, %v724
          %v727 = vadd.f32 %v721, %v725
          %v728 = vadd.f32 %v722, %v726
          %s729 = sld [smem:[#allocation8 + $0x57]]
          %v730 = vstv %s729
          %v731 = vmul.f32 %v241, %v730
          %v732 = vmul.f32 %v242, %v730
          %v733 = vadd.f32 %v727, %v731
          %v734 = vadd.f32 %v728, %v732
          %s735 = sld [smem:[#allocation8 + $0x58]]
          %v736 = vstv %s735
          %v737 = vmul.f32 %v243, %v736
          %v738 = vmul.f32 %v244, %v736
          %v739 = vadd.f32 %v733, %v737
          %v740 = vadd.f32 %v734, %v738
          %s741 = sld [smem:[#allocation8 + $0x59]]
          %v742 = vstv %s741
          %v743 = vadd.f32 %v739, %v742
          %v744 = vadd.f32 %v740, %v742
          %v745 = vmax.f32 %v717, %v743
          %v746 = vmax.f32 %v718, %v744
          %s747 = sld [smem:[#allocation8 + $0x5a]]
          %v748 = vstv %s747
          %v749 = vmul.f32 %v237, %v748
          %v750 = vmul.f32 %v238, %v748
          %s751 = sld [smem:[#allocation8 + $0x5b]]
          %v752 = vstv %s751
          %v753 = vmul.f32 %v239, %v752
          %v754 = vmul.f32 %v240, %v752
          %v755 = vadd.f32 %v749, %v753
          %v756 = vadd.f32 %v750, %v754
          %s757 = sld [smem:[#allocation8 + $0x5c]]
          %v758 = vstv %s757
          %v759 = vmul.f32 %v241, %v758
          %v760 = vmul.f32 %v242, %v758
          %v761 = vadd.f32 %v755, %v759
          %v762 = vadd.f32 %v756, %v760
          %s763 = sld [smem:[#allocation8 + $0x5d]]
          %v764 = vstv %s763
          %v765 = vmul.f32 %v243, %v764
          %v766 = vmul.f32 %v244, %v764
          %v767 = vadd.f32 %v761, %v765
          %v768 = vadd.f32 %v762, %v766
          %s769 = sld [smem:[#allocation8 + $0x5e]]
          %v770 = vstv %s769
          %v771 = vadd.f32 %v767, %v770
          %v772 = vadd.f32 %v768, %v770
          %v773 = vmax.f32 %v745, %v771
          %v774 = vmax.f32 %v746, %v772
          %s775 = sld [smem:[#allocation8 + $0x5f]]
          %v776 = vstv %s775
          %v777 = vmul.f32 %v237, %v776
          %v778 = vmul.f32 %v238, %v776
          %s779 = sld [smem:[#allocation8 + $0x60]]
          %v780 = vstv %s779
          %v781 = vmul.f32 %v239, %v780
          %v782 = vmul.f32 %v240, %v780
          %v783 = vadd.f32 %v777, %v781
          %v784 = vadd.f32 %v778, %v782
          %s785 = sld [smem:[#allocation8 + $0x61]]
          %v786 = vstv %s785
          %v787 = vmul.f32 %v241, %v786
          %v788 = vmul.f32 %v242, %v786
          %v789 = vadd.f32 %v783, %v787
          %v790 = vadd.f32 %v784, %v788
          %s791 = sld [smem:[#allocation8 + $0x62]]
          %v792 = vstv %s791
          %v793 = vmul.f32 %v243, %v792
          %v794 = vmul.f32 %v244, %v792
          %v795 = vadd.f32 %v789, %v793
          %v796 = vadd.f32 %v790, %v794
          %s797 = sld [smem:[#allocation8 + $0x63]]
          %v798 = vstv %s797
          %v799 = vadd.f32 %v795, %v798
          %v800 = vadd.f32 %v796, %v798
          %v801 = vmax.f32 %v773, %v799
          %v802 = vmax.f32 %v774, %v800
          %s803 = sld [smem:[#allocation8 + $0x64]]
          %v804 = vstv %s803
          %v805 = vmul.f32 %v237, %v804
          %v806 = vmul.f32 %v238, %v804
          %s807 = sld [smem:[#allocation8 + $0x65]]
          %v808 = vstv %s807
          %v809 = vmul.f32 %v239, %v808
          %v810 = vmul.f32 %v240, %v808
          %v811 = vadd.f32 %v805, %v809
          %v812 = vadd.f32 %v806, %v810
          %s813 = sld [smem:[#allocation8 + $0x66]]
          %v814 = vstv %s813
          %v815 = vmul.f32 %v241, %v814
          %v816 = vmul.f32 %v242, %v814
          %v817 = vadd.f32 %v811, %v815
          %v818 = vadd.f32 %v812, %v816
          %s819 = sld [smem:[#allocation8 + $0x67]]
          %v820 = vstv %s819
          %v821 = vmul.f32 %v243, %v820
          %v822 = vmul.f32 %v244, %v820
          %v823 = vadd.f32 %v817, %v821
          %v824 = vadd.f32 %v818, %v822
          %s825 = sld [smem:[#allocation8 + $0x68]]
          %v826 = vstv %s825
          %v827 = vadd.f32 %v823, %v826
          %v828 = vadd.f32 %v824, %v826
          %v829 = vmax.f32 %v801, %v827
          %v830 = vmax.f32 %v802, %v828
          %s831 = sld [smem:[#allocation8 + $0x69]]
          %v832 = vstv %s831
          %v833 = vmul.f32 %v237, %v832
          %v834 = vmul.f32 %v238, %v832
          %s835 = sld [smem:[#allocation8 + $0x6a]]
          %v836 = vstv %s835
          %v837 = vmul.f32 %v239, %v836
          %v838 = vmul.f32 %v240, %v836
          %v839 = vadd.f32 %v833, %v837
          %v840 = vadd.f32 %v834, %v838
          %s841 = sld [smem:[#allocation8 + $0x6b]]
          %v842 = vstv %s841
          %v843 = vmul.f32 %v241, %v842
          %v844 = vmul.f32 %v242, %v842
          %v845 = vadd.f32 %v839, %v843
          %v846 = vadd.f32 %v840, %v844
          %s847 = sld [smem:[#allocation8 + $0x6c]]
          %v848 = vstv %s847
          %v849 = vmul.f32 %v243, %v848
          %v850 = vmul.f32 %v244, %v848
          %v851 = vadd.f32 %v845, %v849
          %v852 = vadd.f32 %v846, %v850
          %s853 = sld [smem:[#allocation8 + $0x6d]]
          %v854 = vstv %s853
          %v855 = vadd.f32 %v851, %v854
          %v856 = vadd.f32 %v852, %v854
          %v857 = vmax.f32 %v829, %v855
          %v858 = vmax.f32 %v830, %v856
          %s859 = sld [smem:[#allocation8 + $0x6e]]
          %v860 = vstv %s859
          %v861 = vmul.f32 %v237, %v860
          %v862 = vmul.f32 %v238, %v860
          %s863 = sld [smem:[#allocation8 + $0x6f]]
          %v864 = vstv %s863
          %v865 = vmul.f32 %v239, %v864
          %v866 = vmul.f32 %v240, %v864
          %v867 = vadd.f32 %v861, %v865
          %v868 = vadd.f32 %v862, %v866
          %s869 = sld [smem:[#allocation8 + $0x70]]
          %v870 = vstv %s869
          %v871 = vmul.f32 %v241, %v870
          %v872 = vmul.f32 %v242, %v870
          %v873 = vadd.f32 %v867, %v871
          %v874 = vadd.f32 %v868, %v872
          %s875 = sld [smem:[#allocation8 + $0x71]]
          %v876 = vstv %s875
          %v877 = vmul.f32 %v243, %v876
          %v878 = vmul.f32 %v244, %v876
          %v879 = vadd.f32 %v873, %v877
          %v880 = vadd.f32 %v874, %v878
          %s881 = sld [smem:[#allocation8 + $0x72]]
          %v882 = vstv %s881
          %v883 = vadd.f32 %v879, %v882
          %v884 = vadd.f32 %v880, %v882
          %v885 = vmax.f32 %v857, %v883
          %v886 = vmax.f32 %v858, %v884
          %s887 = sld [smem:[#allocation8 + $0x73]]
          %v888 = vstv %s887
          %v889 = vmul.f32 %v237, %v888
          %v890 = vmul.f32 %v238, %v888
          %s891 = sld [smem:[#allocation8 + $0x74]]
          %v892 = vstv %s891
          %v893 = vmul.f32 %v239, %v892
          %v894 = vmul.f32 %v240, %v892
          %v895 = vadd.f32 %v889, %v893
          %v896 = vadd.f32 %v890, %v894
          %s897 = sld [smem:[#allocation8 + $0x75]]
          %v898 = vstv %s897
          %v899 = vmul.f32 %v241, %v898
          %v900 = vmul.f32 %v242, %v898
          %v901 = vadd.f32 %v895, %v899
          %v902 = vadd.f32 %v896, %v900
          %s903 = sld [smem:[#allocation8 + $0x76]]
          %v904 = vstv %s903
          %v905 = vmul.f32 %v243, %v904
          %v906 = vmul.f32 %v244, %v904
          %v907 = vadd.f32 %v901, %v905
          %v908 = vadd.f32 %v902, %v906
          %s909 = sld [smem:[#allocation8 + $0x77]]
          %v910 = vstv %s909
          %v911 = vadd.f32 %v907, %v910
          %v912 = vadd.f32 %v908, %v910
          %v913 = vmax.f32 %v885, %v911
          %v914 = vmax.f32 %v886, %v912
          %s915 = sld [smem:[#allocation8 + $0x78]]
          %v916 = vstv %s915
          %v917 = vmul.f32 %v237, %v916
          %v918 = vmul.f32 %v238, %v916
          %s919 = sld [smem:[#allocation8 + $0x79]]
          %v920 = vstv %s919
          %v921 = vmul.f32 %v239, %v920
          %v922 = vmul.f32 %v240, %v920
          %v923 = vadd.f32 %v917, %v921
          %v924 = vadd.f32 %v918, %v922
          %s925 = sld [smem:[#allocation8 + $0x7a]]
          %v926 = vstv %s925
          %v927 = vmul.f32 %v241, %v926
          %v928 = vmul.f32 %v242, %v926
          %v929 = vadd.f32 %v923, %v927
          %v930 = vadd.f32 %v924, %v928
          %s931 = sld [smem:[#allocation8 + $0x7b]]
          %v932 = vstv %s931
          %v933 = vmul.f32 %v243, %v932
          %v934 = vmul.f32 %v244, %v932
          %v935 = vadd.f32 %v929, %v933
          %v936 = vadd.f32 %v930, %v934
          %s937 = sld [smem:[#allocation8 + $0x7c]]
          %v938 = vstv %s937
          %v939 = vadd.f32 %v935, %v938
          %v940 = vadd.f32 %v936, %v938
          %v941 = vmax.f32 %v913, %v939
          %v942 = vmax.f32 %v914, %v940
          %s943 = sld [smem:[#allocation8 + $0x7d]]
          %v944 = vstv %s943
          %v945 = vmul.f32 %v237, %v944
          %v946 = vmul.f32 %v238, %v944
          %s947 = sld [smem:[#allocation8 + $0x7e]]
          %v948 = vstv %s947
          %v949 = vmul.f32 %v239, %v948
          %v950 = vmul.f32 %v240, %v948
          %v951 = vadd.f32 %v945, %v949
          %v952 = vadd.f32 %v946, %v950
          %s953 = sld [smem:[#allocation8 + $0x7f]]
          %v954 = vstv %s953
          %v955 = vmul.f32 %v241, %v954
          %v956 = vmul.f32 %v242, %v954
          %v957 = vadd.f32 %v951, %v955
          %v958 = vadd.f32 %v952, %v956
          %s959 = sld [smem:[#allocation8 + $0x80]]
          %v960 = vstv %s959
          %v961 = vmul.f32 %v243, %v960
          %v962 = vmul.f32 %v244, %v960
          %v963 = vadd.f32 %v957, %v961
          %v964 = vadd.f32 %v958, %v962
          %s965 = sld [smem:[#allocation8 + $0x81]]
          %v966 = vstv %s965
          %v967 = vadd.f32 %v963, %v966
          %v968 = vadd.f32 %v964, %v966
          %v969 = vmax.f32 %v941, %v967
          %v970 = vmax.f32 %v942, %v968
          %s971 = sld [smem:[#allocation8 + $0x82]]
          %v972 = vstv %s971
          %v973 = vmul.f32 %v237, %v972
          %v974 = vmul.f32 %v238, %v972
          %s975 = sld [smem:[#allocation8 + $0x83]]
          %v976 = vstv %s975
          %v977 = vmul.f32 %v239, %v976
          %v978 = vmul.f32 %v240, %v976
          %v979 = vadd.f32 %v973, %v977
          %v980 = vadd.f32 %v974, %v978
          %s981 = sld [smem:[#allocation8 + $0x84]]
          %v982 = vstv %s981
          %v983 = vmul.f32 %v241, %v982
          %v984 = vmul.f32 %v242, %v982
          %v985 = vadd.f32 %v979, %v983
          %v986 = vadd.f32 %v980, %v984
          %s987 = sld [smem:[#allocation8 + $0x85]]
          %v988 = vstv %s987
          %v989 = vmul.f32 %v243, %v988
          %v990 = vmul.f32 %v244, %v988
          %v991 = vadd.f32 %v985, %v989
          %v992 = vadd.f32 %v986, %v990
          %s993 = sld [smem:[#allocation8 + $0x86]]
          %v994 = vstv %s993
          %v995 = vadd.f32 %v991, %v994
          %v996 = vadd.f32 %v992, %v994
          %v997 = vmax.f32 %v969, %v995
          %v998 = vmax.f32 %v970, %v996
          %s999 = sld [smem:[#allocation8 + $0x87]]
          %v1000 = vstv %s999
          %v1001 = vmul.f32 %v237, %v1000
          %v1002 = vmul.f32 %v238, %v1000
          %s1003 = sld [smem:[#allocation8 + $0x88]]
          %v1004 = vstv %s1003
          %v1005 = vmul.f32 %v239, %v1004
          %v1006 = vmul.f32 %v240, %v1004
          %v1007 = vadd.f32 %v1001, %v1005
          %v1008 = vadd.f32 %v1002, %v1006
          %s1009 = sld [smem:[#allocation8 + $0x89]]
          %v1010 = vstv %s1009
          %v1011 = vmul.f32 %v241, %v1010
          %v1012 = vmul.f32 %v242, %v1010
          %v1013 = vadd.f32 %v1007, %v1011
          %v1014 = vadd.f32 %v1008, %v1012
          %s1015 = sld [smem:[#allocation8 + $0x8a]]
          %v1016 = vstv %s1015
          %v1017 = vmul.f32 %v243, %v1016
          %v1018 = vmul.f32 %v244, %v1016
          %v1019 = vadd.f32 %v1013, %v1017
          %v1020 = vadd.f32 %v1014, %v1018
          %s1021 = sld [smem:[#allocation8 + $0x8b]]
          %v1022 = vstv %s1021
          %v1023 = vadd.f32 %v1019, %v1022
          %v1024 = vadd.f32 %v1020, %v1022
          %v1025 = vmax.f32 %v997, %v1023
          %v1026 = vmax.f32 %v998, %v1024
          %s1027 = sld [smem:[#allocation8 + $0x8c]]
          %v1028 = vstv %s1027
          %v1029 = vmul.f32 %v237, %v1028
          %v1030 = vmul.f32 %v238, %v1028
          %s1031 = sld [smem:[#allocation8 + $0x8d]]
          %v1032 = vstv %s1031
          %v1033 = vmul.f32 %v239, %v1032
          %v1034 = vmul.f32 %v240, %v1032
          %v1035 = vadd.f32 %v1029, %v1033
          %v1036 = vadd.f32 %v1030, %v1034
          %s1037 = sld [smem:[#allocation8 + $0x8e]]
          %v1038 = vstv %s1037
          %v1039 = vmul.f32 %v241, %v1038
          %v1040 = vmul.f32 %v242, %v1038
          %v1041 = vadd.f32 %v1035, %v1039
          %v1042 = vadd.f32 %v1036, %v1040
          %s1043 = sld [smem:[#allocation8 + $0x8f]]
          %v1044 = vstv %s1043
          %v1045 = vmul.f32 %v243, %v1044
          %v1046 = vmul.f32 %v244, %v1044
          %v1047 = vadd.f32 %v1041, %v1045
          %v1048 = vadd.f32 %v1042, %v1046
          %s1049 = sld [smem:[#allocation8 + $0x90]]
          %v1050 = vstv %s1049
          %v1051 = vadd.f32 %v1047, %v1050
          %v1052 = vadd.f32 %v1048, %v1050
          %v1053 = vmax.f32 %v1025, %v1051
          %v1054 = vmax.f32 %v1026, %v1052
          %s1055 = sld [smem:[#allocation8 + $0x91]]
          %v1056 = vstv %s1055
          %v1057 = vmul.f32 %v237, %v1056
          %v1058 = vmul.f32 %v238, %v1056
          %s1059 = sld [smem:[#allocation8 + $0x92]]
          %v1060 = vstv %s1059
          %v1061 = vmul.f32 %v239, %v1060
          %v1062 = vmul.f32 %v240, %v1060
          %v1063 = vadd.f32 %v1057, %v1061
          %v1064 = vadd.f32 %v1058, %v1062
          %s1065 = sld [smem:[#allocation8 + $0x93]]
          %v1066 = vstv %s1065
          %v1067 = vmul.f32 %v241, %v1066
          %v1068 = vmul.f32 %v242, %v1066
          %v1069 = vadd.f32 %v1063, %v1067
          %v1070 = vadd.f32 %v1064, %v1068
          %s1071 = sld [smem:[#allocation8 + $0x94]]
          %v1072 = vstv %s1071
          %v1073 = vmul.f32 %v243, %v1072
          %v1074 = vmul.f32 %v244, %v1072
          %v1075 = vadd.f32 %v1069, %v1073
          %v1076 = vadd.f32 %v1070, %v1074
          %s1077 = sld [smem:[#allocation8 + $0x95]]
          %v1078 = vstv %s1077
          %v1079 = vadd.f32 %v1075, %v1078
          %v1080 = vadd.f32 %v1076, %v1078
          %v1081 = vmax.f32 %v1053, %v1079
          %v1082 = vmax.f32 %v1054, %v1080
          %s1083 = sld [smem:[#allocation8 + $0x96]]
          %v1084 = vstv %s1083
          %v1085 = vmul.f32 %v237, %v1084
          %v1086 = vmul.f32 %v238, %v1084
          %s1087 = sld [smem:[#allocation8 + $0x97]]
          %v1088 = vstv %s1087
          %v1089 = vmul.f32 %v239, %v1088
          %v1090 = vmul.f32 %v240, %v1088
          %v1091 = vadd.f32 %v1085, %v1089
          %v1092 = vadd.f32 %v1086, %v1090
          %s1093 = sld [smem:[#allocation8 + $0x98]]
          %v1094 = vstv %s1093
          %v1095 = vmul.f32 %v241, %v1094
          %v1096 = vmul.f32 %v242, %v1094
          %v1097 = vadd.f32 %v1091, %v1095
          %v1098 = vadd.f32 %v1092, %v1096
          %s1099 = sld [smem:[#allocation8 + $0x99]]
          %v1100 = vstv %s1099
          %v1101 = vmul.f32 %v243, %v1100
          %v1102 = vmul.f32 %v244, %v1100
          %v1103 = vadd.f32 %v1097, %v1101
          %v1104 = vadd.f32 %v1098, %v1102
          %s1105 = sld [smem:[#allocation8 + $0x9a]]
          %v1106 = vstv %s1105
          %v1107 = vadd.f32 %v1103, %v1106
          %v1108 = vadd.f32 %v1104, %v1106
          %v1109 = vmax.f32 %v1081, %v1107
          %v1110 = vmax.f32 %v1082, %v1108
          %s1111 = sld [smem:[#allocation8 + $0x9b]]
          %v1112 = vstv %s1111
          %v1113 = vmul.f32 %v237, %v1112
          %v1114 = vmul.f32 %v238, %v1112
          %s1115 = sld [smem:[#allocation8 + $0x9c]]
          %v1116 = vstv %s1115
          %v1117 = vmul.f32 %v239, %v1116
          %v1118 = vmul.f32 %v240, %v1116
          %v1119 = vadd.f32 %v1113, %v1117
          %v1120 = vadd.f32 %v1114, %v1118
          %s1121 = sld [smem:[#allocation8 + $0x9d]]
          %v1122 = vstv %s1121
          %v1123 = vmul.f32 %v241, %v1122
          %v1124 = vmul.f32 %v242, %v1122
          %v1125 = vadd.f32 %v1119, %v1123
          %v1126 = vadd.f32 %v1120, %v1124
          %s1127 = sld [smem:[#allocation8 + $0x9e]]
          %v1128 = vstv %s1127
          %v1129 = vmul.f32 %v243, %v1128
          %v1130 = vmul.f32 %v244, %v1128
          %v1131 = vadd.f32 %v1125, %v1129
          %v1132 = vadd.f32 %v1126, %v1130
          %s1133 = sld [smem:[#allocation8 + $0x9f]]
          %v1134 = vstv %s1133
          %v1135 = vadd.f32 %v1131, %v1134
          %v1136 = vadd.f32 %v1132, %v1134
          %v1137 = vmax.f32 %v1109, %v1135
          %v1138 = vmax.f32 %v1110, %v1136
          %s1139 = smul.u32 %s232, 3
          %s1140 = smul.addr %s1139, 8
          %s1141 = scalar_lea.vmem %s222, %s1140 [#allocation9]
          %1142 = vst [vmem:[%s1141] sm:$0xff] %v1137
          %1143 = vst [vmem:[%s1141 + $0x8] sm:$0xff] %v1138
          %v1144 = vadd.f32 %v237, %v238
          %1145 = vadd.xlane.f32.xlu0 %v1144
          %v1146 = vpop.xlane.xlu0 %1145
          %v1147 = vadd.f32 %v239, %v240
          %1148 = vadd.xlane.f32.xlu0 %v1147
          %v1149 = vpop.xlane.xlu0 %1148
          %v1150 = vadd.f32 %v241, %v242
          %1151 = vadd.xlane.f32.xlu0 %v1150
          %v1152 = vpop.xlane.xlu0 %1151
          %v1153 = vadd.f32 %v243, %v244
          %1154 = vadd.xlane.f32.xlu0 %v1153
          %v1155 = vpop.xlane.xlu0 %1154
          %v1156 = vld [vmem:[#allocation6 + $0xb] sm:$0x1]
          %v1157 = vperm.slane %v1156, 0
          %v1158 = vmul.f32 %v237, %v241
          %v1159 = vmul.f32 %v238, %v242
          %v1160 = vadd.f32 %v1158, %v1159
          %1161 = vadd.xlane.f32.xlu0 %v1160
          %v1162 = vpop.xlane.xlu0 %1161
          %v1163 = vld [vmem:[#allocation6] sm:$0x1]
          %v1164 = vperm.slane %v1163, 0
          %v1165 = vmul.f32 %v1162, %v1164
          %v1166 = vadd.f32 %v1157, %v1165
          %v1167 = vmul.f32 %v237, %v243
          %v1168 = vmul.f32 %v238, %v244
          %v1169 = vadd.f32 %v1167, %v1168
          %1170 = vadd.xlane.f32.xlu0 %v1169
          %v1171 = vpop.xlane.xlu0 %1170
          %v1172 = vld [vmem:[#allocation6 + $0x1] sm:$0x1]
          %v1173 = vperm.slane %v1172, 0
          %v1174 = vmul.f32 %v1171, %v1173
          %v1175 = vadd.f32 %v1166, %v1174
          %v1176 = vld [vmem:[#allocation6 + $0x4] sm:$0x1]
          %v1177 = vmul.f32 %v237, %v237
          %v1178 = vmul.f32 %v238, %v238
          %v1179 = vadd.f32 %v1177, %v1178
          %1180 = vadd.xlane.f32.xlu0 %v1179
          %v1181 = vpop.xlane.xlu0 %1180
          %v1182 = vperm.slane %v1176, 0
          %v1183 = vmul.f32 %v1181, %v1182
          %v1184 = vadd.f32 %v1157, %v1183
          %v1185 = vmul.f32 %v241, %v241
          %v1186 = vmul.f32 %v242, %v242
          %v1187 = vadd.f32 %v1185, %v1186
          %1188 = vadd.xlane.f32.xlu0 %v1187
          %v1189 = vpop.xlane.xlu0 %1188
          %v1190 = vmul.f32 %v1189, %v1182
          %v1191 = vadd.f32 %v1157, %v1190
          %v1192 = vld [vmem:[#allocation6 + $0x5] sm:$0x1]
          %v1193 = vmul.f32 %v237, %v239
          %v1194 = vmul.f32 %v238, %v240
          %v1195 = vadd.f32 %v1193, %v1194
          %1196 = vadd.xlane.f32.xlu0 %v1195
          %v1197 = vpop.xlane.xlu0 %1196
          %v1198 = vperm.slane %v1192, 0
          %v1199 = vmul.f32 %v1197, %v1198
          %v1200 = vadd.f32 %v1184, %v1199
          %v1201 = vmul.f32 %v241, %v243
          %v1202 = vmul.f32 %v242, %v244
          %v1203 = vadd.f32 %v1201, %v1202
          %1204 = vadd.xlane.f32.xlu0 %v1203
          %v1205 = vpop.xlane.xlu0 %1204
          %v1206 = vmul.f32 %v1205, %v1198
          %v1207 = vadd.f32 %v1191, %v1206
          %v1208 = vld [vmem:[#allocation6 + $0x7] sm:$0x1]
          %v1209 = vld [vmem:[#allocation6 + $0x9] sm:$0x1]
          %v1210 = vadd.f32 %v1146, %v1152
          %v1211 = vperm.slane %v1208, 0
          %v1212 = vmul.f32 %v1210, %v1211
          %v1213 = vadd.f32 %v1175, %v1212
          %v1214 = vperm.slane %v1209, 0
          %v1215 = vmul.f32 %v1146, %v1214
          %v1216 = vadd.f32 %v1200, %v1215
          %v1217 = vmul.f32 %v1152, %v1214
          %v1218 = vadd.f32 %v1207, %v1217
          %v1219 = vmul.f32 %v239, %v241
          %v1220 = vmul.f32 %v240, %v242
          %v1221 = vadd.f32 %v1219, %v1220
          %1222 = vadd.xlane.f32.xlu0 %v1221
          %v1223 = vpop.xlane.xlu0 %1222
          %v1224 = vld [vmem:[#allocation6 + $0x2] sm:$0x1]
          %v1225 = vperm.slane %v1224, 0
          %v1226 = vmul.f32 %v1223, %v1225
          %v1227 = vadd.f32 %v1213, %v1226
          %v1228 = vmul.f32 %v239, %v243
          %v1229 = vmul.f32 %v240, %v244
          %v1230 = vadd.f32 %v1228, %v1229
          %1231 = vadd.xlane.f32.xlu0 %v1230
          %v1232 = vpop.xlane.xlu0 %1231
          %v1233 = vld [vmem:[#allocation6 + $0x3] sm:$0x1]
          %v1234 = vperm.slane %v1233, 0
          %v1235 = vmul.f32 %v1232, %v1234
          %v1236 = vadd.f32 %v1227, %v1235
          %v1237 = vld [vmem:[#allocation6 + $0x6] sm:$0x1]
          %v1238 = vmul.f32 %v239, %v239
          %v1239 = vmul.f32 %v240, %v240
          %v1240 = vadd.f32 %v1238, %v1239
          %1241 = vadd.xlane.f32.xlu0 %v1240
          %v1242 = vpop.xlane.xlu0 %1241
          %v1243 = vperm.slane %v1237, 0
          %v1244 = vmul.f32 %v1242, %v1243
          %v1245 = vadd.f32 %v1216, %v1244
          %v1246 = vmul.f32 %v243, %v243
          %v1247 = vmul.f32 %v244, %v244
          %v1248 = vadd.f32 %v1246, %v1247
          %1249 = vadd.xlane.f32.xlu0 %v1248
          %v1250 = vpop.xlane.xlu0 %1249
          %v1251 = vmul.f32 %v1250, %v1243
          %v1252 = vadd.f32 %v1218, %v1251
          %v1253 = vld [vmem:[#allocation6 + $0x8] sm:$0x1]
          %v1254 = vld [vmem:[#allocation6 + $0xa] sm:$0x1]
          %v1255 = vadd.f32 %v1149, %v1155
          %v1256 = vperm.slane %v1253, 0
          %v1257 = vmul.f32 %v1255, %v1256
          %v1258 = vadd.f32 %v1236, %v1257
          %v1259 = vperm.slane %v1254, 0
          %v1260 = vmul.f32 %v1149, %v1259
          %v1261 = vadd.f32 %v1245, %v1260
          %v1262 = vmul.f32 %v1155, %v1259
          %v1263 = vadd.f32 %v1252, %v1262
          %v1264 = vmul.f32 %v1261, %v1263
          %v1265 = vmax.f32 %v1264, 1e-16
          %v1266 = vrsqrt.pop %v1265
          %v1267 = vmul.f32 %v1266, %v1265
          %v1268 = vmul.f32 %v1267, %v1266
          %v1269 = vmul.f32 0.5, %v1268
          %v1270 = vsub.f32 1.5, %v1269
          %v1271 = vmul.f32 %v1266, %v1270
          %vm1272 = vweird.f32 %v1265
          %vm1273 = vweird.f32 %v1266
          %vm1274 = vmor %vm1272, %vm1273
          %v1275 = vsel %vm1274, %v1266, %v1271
          %v1276 = vmul.f32 %v1258, %v1275
          %vm1277 = vcmask 261120
          %1278 = vst.msk [vmem:[%s1141 + $0x10] sm:$0xff] %vm1277, %v1276
        $region49: #{tpu_custom_call.1} parent=31 // loop_footer
          %s230 = sadd.s32 1, %s226
        $region50: #{tpu_custom_call.1} parent=31 // loop_footer_branch
          %225 = sbr.rel target = $region46
        $region51: #{tpu_custom_call.1} parent=31 // loop_exit
          _
        %s1279 = sand.u32 %s98, 1
        %s1280 = scalar_lea.sflag [#allocation4], %s1279
        %s1281 = sand.u32 %s98, 1
        %s1282 = smul.addr %s1281, 120
        %s1283 = scalar_lea.vmem [#allocation9], %s1282
        // Predicated region
        $region52: #{tpu_custom_call.1} parent=31 // pred_check
          %p1284 = pneg %p108
        $region53: #{tpu_custom_call.1} parent=31 // pred_check_branch
          %1286 = sbr.rel (%p1284) target = $region55
        $region54: #{tpu_custom_call.1} parent=31 // pred_region
          %s1287 = smul.u32 5, %s22
          %1289 = vsyncadd %s1280, 0
          %s1290 = smul.addr %s1287, 3
          %s1291 = smul.addr %s1290, 8
          %s1292 = scalar_lea.hbm %s3, %s1291
          %s1293 = sshll.u32 %s1283, 4
          %s1294 = int_to_ptr.vmem [resolvable:$true] %s1293
          %s1295 = sshll.u32 %s1292, 4
          %s1296 = int_to_ptr.hbm [resolvable:$true] %s1295
          %1301 = dma.vmem_to_hbm [thread:$0]  %s1294, 1920, %s1296, %s1280, 384, 384, 24
        $region55: #{tpu_custom_call.1} parent=31 // pred_fallthru
          _
      $region32: #{tpu_custom_call.1} parent=5 // pred_fallthru
        _
      %p1302 = scmp.le.s32.totalorder 2, %s17
      // Predicated region
      $region56: #{tpu_custom_call.1} parent=5 // pred_check
        %p1303 = pneg %p1302
      $region57: #{tpu_custom_call.1} parent=5 // pred_check_branch
        %1305 = sbr.rel (%p1303) target = $region59
      $region58: #{tpu_custom_call.1} parent=5 // pred_region
        %s1306 = ssub.s32 %s17, 2
        // Predicated region
        $region60: #{tpu_custom_call.1} parent=58 // pred_check
          %p1307 = pneg %p114
        $region61: #{tpu_custom_call.1} parent=58 // pred_check_branch
          %1309 = sbr.rel (%p1307) target = $region63
        $region62: #{tpu_custom_call.1} parent=58 // pred_region
          %s1310 = sand.u32 %s99, 1
          %s1311 = scalar_lea.sflag [#allocation4], %s1310
          %s1312 = sand.u32 %s99, 1
          %s1313 = smul.addr %s1312, 120
          %s1314 = scalar_lea.vmem [#allocation9], %s1313
          %1316 = dma.done %s1311, 1920
        $region63: #{tpu_custom_call.1} parent=58 // pred_fallthru
          _
      $region59: #{tpu_custom_call.1} parent=5 // pred_fallthru
        _
    $region6: #{tpu_custom_call.1} parent=1 // loop_footer
      %s21 = sadd.s32 1, %s17
    $region7: #{tpu_custom_call.1} parent=1 // loop_footer_branch
      %16 = sbr.rel target = $region3
    $region8: #{tpu_custom_call.1} parent=1 // loop_exit
      _
    %1317 = vsyncpa [#allocation3], 1
    %s1318 = scalar_lea.sflag [#allocation3], 1
    %1319 = vsyncpa %s1318, 1
    %1320 = vsyncpa [#allocation7], 1
    %1321 = vsyncpa [#allocation4], 1
    %s1322 = scalar_lea.sflag [#allocation4], 1
    %1323 = vsyncpa %s1322, 1
    %1324 = vsyncpa [#allocation5], 1
    %s1325 = scalar_lea.sflag [#allocation5], 1
    %1326 = vsyncpa %s1325, 1

</llo_original>
